<compile_context>
chip_gen: v6e
topology: v6e:2x2x1
jax: 0.10.0
libtpu: 0.0.40
codegen_flags: <defaults>
</compile_context>

<pallas_src>
import functools

import jax
import jax.numpy as jnp
from jax import lax
from jax.experimental import pallas as pl
from jax.experimental.pallas import tpu as pltpu

# ---- module hyper-params (from the PyTorch source) ----
N_EMBD = 184
BLOCK_SIZE = 128          # max sequence length (tril buffer size); we use T <= BLOCK_SIZE
_MXU_TARGET_ROWS = 256    # v6e/v7x MXU height (also >= v5e's 128)


def _pick_block_batch(B, T, target_rows=_MXU_TARGET_ROWS):
    """Pick Bb (a divisor of B) so each grid step feeds ~target_rows LHS rows to the MXU."""
    want = max(1, -(-target_rows // T))                              # ceil(target / T)
    divs = [d for d in range(1, B + 1) if B % d == 0 and d <= want]
    best = max(divs)
    # Prefer >= 2 grid steps (v7x has 2 TensorCores) when we can still fill at least half
    # of the MXU row target per step.
    for d in sorted(divs, reverse=True):
        if B // d >= 2 and d * T * 2 >= target_rows:
            return d
    return best


# -------------------- fused Pallas kernel --------------------

def _mha_fused_kernel(x_ref, wqkv_ref, wp_ref, bp_ref, o_ref, *,
                      num_heads, head_pad, compute_dtype):
    """Fused multi-head attention + output projection for Bb batch elements.

    x_ref    : (Bb, T, C)        VMEM
    wqkv_ref : (C, 3*H*Hp)       VMEM  [Q | K | V], head stride Hp; Q pre-scaled by C**-0.5
    wp_ref   : (H*Hp, C)         VMEM  output projection (padded rows are zero), pre-cast
    bp_ref   : (1, C)            VMEM  f32 bias
    o_ref    : (Bb, T, C)        VMEM  lane-dense (last block dim == full dim)
    """
    Bb, T, C = x_ref.shape
    Hp = head_pad
    HHp = num_heads * Hp

    # One lane-dense MXU matmul on the flattened (Bb*T, C) slab produces Q,K,V for every
    # head and batch element at once.  C**-0.5 is already folded into the Q weight columns.
    x2d = x_ref[...].reshape(Bb * T, C).astype(compute_dtype)
    qkv = jnp.dot(x2d, wqkv_ref[...], preferred_element_type=jnp.float32)   # (Bb*T, 3*H*Hp)
    qkv = qkv.reshape(Bb, T, 3 * HHp).astype(compute_dtype)                 # one hoisted cast

    # Causal mask built once per grid step, 3-D so the head loop does no re-broadcasting.
    row = lax.broadcasted_iota(jnp.int32, (Bb, T, T), 1)
    col = lax.broadcasted_iota(jnp.int32, (Bb, T, T), 2)
    causal = col <= row

    head_outs = []
    for h in range(num_heads):                       # static trace-time loop (H = 4)
        lo = h * Hp
        q_h = qkv[:, :, lo:lo + Hp]                                  # (Bb, T, Hp) 64-aligned
        k_h = qkv[:, :, HHp + lo:HHp + lo + Hp]
        v_h = qkv[:, :, 2 * HHp + lo:2 * HHp + lo + Hp]

        # (q*scale) @ k^T, batched over Bb, no materialized transpose.  Zero-padded
        # columns contribute exactly zero to the contraction.
        s = jnp.einsum('btd,bsd->bts', q_h, k_h,
                       preferred_element_type=jnp.float32)           # (Bb, T, T) f32
        s = jnp.where(causal, s, jnp.float32(-jnp.inf))
        s = s - jnp.max(s, axis=-1, keepdims=True)
        p = jnp.exp(s)                                               # f32 softmax math
        p = p * pl.reciprocal(jnp.sum(p, axis=-1, keepdims=True), approx=True)

        head_outs.append(jnp.einsum('bts,bsd->btd', p.astype(compute_dtype), v_h,
                                    preferred_element_type=jnp.float32))   # (Bb, T, Hp) f32

    # Concatenate heads in VMEM/registers (no HBM intermediate), flatten, project on MXU.
    cat = jnp.concatenate(head_outs, axis=-1).reshape(Bb * T, HHp).astype(compute_dtype)
    out = jnp.dot(cat, wp_ref[...], preferred_element_type=jnp.float32) + bp_ref[...]
    o_ref[...] = out.reshape(Bb, T, C).astype(o_ref.dtype)
    # TODO(synk): dropout (p=0.4, training mode) not implemented -- eval-mode identity.


# -------------------- wrapper --------------------

def multi_head_attention(x, wq, wk, wv, w_proj, b_proj, *, compute_dtype=jnp.float32):
    """x: (B, T, C). wq/wk/wv: (H, C, Hs). w_proj: (H*Hs, C). b_proj: (C,).

    compute_dtype: dtype fed to the MXU.  bfloat16 is recommended on every TPU generation
    (v5e included: its MXU runs bf16 natively; the v5e limitation is only VPU/EUP bf16
    arithmetic, which this kernel never uses -- accumulation and softmax stay f32).
    """
    B, T, C = x.shape
    H, _, Hs = wq.shape
    assert C == N_EMBD and T <= BLOCK_SIZE

    # Pad the per-head column stride to a multiple of 64 lanes so in-kernel head slices are
    # lane-aligned (no 46-lane-offset relayouts).  Exact: Q/K padding contracts against
    # zeros, V padding is absorbed by matching zero rows in the projection weight.
    Hp = -(-Hs // 64) * 64

    scale = jnp.float32(C) ** jnp.float32(-0.5)      # C**-0.5 with C = n_embd (matches ref)

    def _stack(w, col_scale=None):                   # (H, C, Hs) -> (C, H*Hp), zero-padded
        w = jnp.transpose(w, (1, 0, 2))              # (C, H, Hs)
        if col_scale is not None:
            w = w * col_scale                        # fold the score scale into Q weights
        w = jnp.pad(w, ((0, 0), (0, 0), (0, Hp - Hs)))
        return w.reshape(C, H * Hp)

    wqkv = jnp.concatenate([_stack(wq, scale), _stack(wk), _stack(wv)], axis=-1)
    wp = jnp.pad(w_proj.reshape(H, Hs, C),
                 ((0, 0), (0, Hp - Hs), (0, 0))).reshape(H * Hp, C)

    # Pre-cast weights once outside the kernel: halves weight DMA/VMEM bytes in bf16 mode
    # and removes per-grid-step VPU cast filler from the critical path.
    wqkv = wqkv.astype(compute_dtype)
    wp = wp.astype(compute_dtype)
    bp = b_proj.reshape(1, C).astype(jnp.float32)    # added directly to the f32 accumulator

    # Batch-block so each grid step feeds ~256 LHS rows to the MXU and the per-step
    # overhead is amortized.  Working set per step is ~1-2 MiB: far under scoped VMEM on
    # all generations (including v7x's 64 MiB), so no tile shrinking is needed.
    Bb = _pick_block_batch(B, T)
    grid = (B // Bb,)

    kernel = functools.partial(_mha_fused_kernel, num_heads=H, head_pad=Hp,
                               compute_dtype=compute_dtype)

    return pl.pallas_call(
        kernel,
        out_shape=jax.ShapeDtypeStruct((B, T, C), x.dtype),
        grid_spec=pltpu.PrefetchScalarGridSpec(
            num_scalar_prefetch=0,
            grid=grid,
            in_specs=[
                pl.BlockSpec((Bb, T, C), lambda b: (b, 0, 0)),           # x block
                pl.BlockSpec((C, 3 * H * Hp), lambda b: (0, 0)),         # stacked QKV weights
                pl.BlockSpec((H * Hp, C), lambda b: (0, 0)),             # projection weight
                pl.BlockSpec((1, C), lambda b: (0, 0)),                  # projection bias
            ],
            out_specs=pl.BlockSpec((Bb, T, C), lambda b: (b, 0, 0)),     # lane-dense (full C)
        ),
        compiler_params=pltpu.CompilerParams(
            dimension_semantics=("parallel",)),                          # megacore over batch blocks
    )(x, wqkv, wp, bp)


# -------------------- reference (plain JAX) --------------------

def _reference(x, wq, wk, wv, w_proj, b_proj):
    B, T, C = x.shape
    H, _, Hs = wq.shape
    outs = []
    for h in range(H):
        q = x @ wq[h]
        k = x @ wk[h]
        v = x @ wv[h]
        wei = (q @ jnp.swapaxes(k, -1, -2)) * (C ** -0.5)
        mask = jnp.tril(jnp.ones((T, T), dtype=bool))
        wei = jnp.where(mask, wei, -jnp.inf)
        wei = jax.nn.softmax(wei, axis=-1)
        outs.append(wei @ v)
    cat = jnp.concatenate(outs, axis=-1)
    return cat @ w_proj + b_proj


if __name__ == "__main__":
    # small, module-consistent shapes: n_embd=184, 4 heads of head_size=46, seq=8
    B, T, C = 2, 8, N_EMBD
    num_heads, head_size = 4, N_EMBD // 4   # 4 * 46 = 184

    key = jax.random.PRNGKey(0)
    kx, kq, kk, kv, kp, kb = jax.random.split(key, 6)

    x = jax.random.normal(kx, (B, T, C), dtype=jnp.float32)
    # Linear(n_embd, head_size, bias=False): y = x @ W^T ; store transposed (C, Hs)
    wq = 0.05 * jax.random.normal(kq, (num_heads, C, head_size), dtype=jnp.float32)
    wk = 0.05 * jax.random.normal(kk, (num_heads, C, head_size), dtype=jnp.float32)
    wv = 0.05 * jax.random.normal(kv, (num_heads, C, head_size), dtype=jnp.float32)
    # proj: Linear(num_heads*head_size, n_embd) -> store transposed (H*Hs, C) + bias (C,)
    w_proj = 0.05 * jax.random.normal(kp, (num_heads * head_size, C), dtype=jnp.float32)
    b_proj = 0.05 * jax.random.normal(kb, (C,), dtype=jnp.float32)

    ref = _reference(x, wq, wk, wv, w_proj, b_proj)

    # f32 MXU-input path (exact-ish).
    out = multi_head_attention(x, wq, wk, wv, w_proj, b_proj, compute_dtype=jnp.float32)
    out = jax.block_until_ready(out)
    assert out.shape == (B, T, C)
    assert jnp.allclose(out, ref, atol=2e-3, rtol=2e-3), "f32 path mismatch vs reference"

    # bf16 MXU-input path (throughput mode, valid on v5e/v6e/v7x): f32 accumulation +
    # f32 softmax, so it stays close to the reference (loose tolerance for bf16 rounding).
    out_bf16 = multi_head_attention(x, wq, wk, wv, w_proj, b_proj,
                                    compute_dtype=jnp.bfloat16)
    out_bf16 = jax.block_until_ready(out_bf16)
    assert float(jnp.max(jnp.abs(out_bf16 - ref))) < 5e-2, "bf16 path mismatch vs reference"

    print("KERNEL_OK")
</pallas_src>

<mosaic_0001>
module attributes {stable_mosaic.version = 11 : i64} {
  func.func @_mha_fused_kernel(%arg0: i32, %arg1: memref<2x8x184xf32, #tpu.memory_space<vmem>>, %arg2: memref<184x768xf32, #tpu.memory_space<vmem>>, %arg3: memref<256x184xf32, #tpu.memory_space<vmem>>, %arg4: memref<1x184xf32, #tpu.memory_space<vmem>>, %arg5: memref<2x8x184xf32, #tpu.memory_space<vmem>>) attributes {dimension_semantics = [#tpu.dimension_semantics<parallel>], iteration_bounds = array<i64: 1>, scalar_prefetch = 0 : i64, scratch_operands = 0 : i64, tpu.core_type = #tpu.core_type<tc>, window_params = [{transform_indices = @transform_0, window_bounds = array<i64: 2, 8, 184>}, {pipeline_mode = #tpu.pipeline_mode<synchronous>, transform_indices = @transform_1, window_bounds = array<i64: 184, 768>}, {pipeline_mode = #tpu.pipeline_mode<synchronous>, transform_indices = @transform_2, window_bounds = array<i64: 256, 184>}, {pipeline_mode = #tpu.pipeline_mode<synchronous>, transform_indices = @transform_3, window_bounds = array<i64: 1, 184>}, {transform_indices = @transform_4, window_bounds = array<i64: 2, 8, 184>}]} {
    %c0 = arith.constant 0 : index
    %c0_0 = arith.constant 0 : index
    %c0_1 = arith.constant 0 : index
    %0 = vector.load %arg1[%c0, %c0_0, %c0_1] : memref<2x8x184xf32, #tpu.memory_space<vmem>>, vector<2x8x184xf32>
    %1 = vector.shape_cast %0 : vector<2x8x184xf32> to vector<16x184xf32>
    %c0_2 = arith.constant 0 : index
    %c0_3 = arith.constant 0 : index
    %2 = vector.load %arg2[%c0_2, %c0_3] : memref<184x768xf32, #tpu.memory_space<vmem>>, vector<184x768xf32>
    %cst = arith.constant dense<0.000000e+00> : vector<16x768xf32>
    %3 = tpu.matmul %1, %2, %cst {dimension_numbers = #tpu.dot_dimension_numbers<[1], [0], [0], [1], [0, 0, 1, 1], [], []>} : vector<16x184xf32>, vector<184x768xf32>, vector<16x768xf32> -> vector<16x768xf32>
    %4 = vector.shape_cast %3 : vector<16x768xf32> to vector<2x8x768xf32>
    %5 = tpu.iota {dimensions = array<i32: 1>} : vector<2x8x8xi32>
    %6 = tpu.iota {dimensions = array<i32: 2>} : vector<2x8x8xi32>
    %7 = arith.cmpi sle, %6, %5 : vector<2x8x8xi32>
    %8 = vector.extract_strided_slice %4 {offsets = [0, 0, 0], sizes = [2, 8, 64], strides = [1, 1, 1]} : vector<2x8x768xf32> to vector<2x8x64xf32>
    %9 = vector.extract_strided_slice %4 {offsets = [0, 0, 256], sizes = [2, 8, 64], strides = [1, 1, 1]} : vector<2x8x768xf32> to vector<2x8x64xf32>
    %10 = vector.extract_strided_slice %4 {offsets = [0, 0, 512], sizes = [2, 8, 64], strides = [1, 1, 1]} : vector<2x8x768xf32> to vector<2x8x64xf32>
    "tpu.trace_start"() <{level = 10 : i32, message = "btd,bsd->bts"}> : () -> ()
    %cst_4 = arith.constant dense<0.000000e+00> : vector<2x8x8xf32>
    %11 = tpu.matmul %8, %9, %cst_4 {dimension_numbers = #tpu.dot_dimension_numbers<[2], [2], [1], [1], [0, 0, 0, 1, 1, 1], [0], [0]>} : vector<2x8x64xf32>, vector<2x8x64xf32>, vector<2x8x8xf32> -> vector<2x8x8xf32>
    %cst_5 = arith.constant 0xFF800000 : f32
    "tpu.trace_stop"() : () -> ()
    %12 = vector.broadcast %cst_5 : f32 to vector<2x8x8xf32>
    %13 = arith.select %7, %11, %12 : vector<2x8x8xi1>, vector<2x8x8xf32>
    %cst_6 = arith.constant dense<0xFF800000> : vector<2x8xf32>
    %14 = vector.multi_reduction <maximumf>, %13, %cst_6 [2] : vector<2x8x8xf32> to vector<2x8xf32>
    %15 = vector.shape_cast %14 : vector<2x8xf32> to vector<2x8x1xf32>
    %16 = vector.broadcast %15 : vector<2x8x1xf32> to vector<2x8x8xf32>
    %17 = arith.subf %13, %16 : vector<2x8x8xf32>
    %18 = math.exp %17 : vector<2x8x8xf32>
    %cst_7 = arith.constant dense<0.000000e+00> : vector<2x8xf32>
    %19 = vector.multi_reduction <add>, %18, %cst_7 [2] : vector<2x8x8xf32> to vector<2x8xf32>
    %20 = vector.shape_cast %19 : vector<2x8xf32> to vector<2x8x1xf32>
    %21 = tpu.reciprocal %20 {approx = true} : vector<2x8x1xf32> -> vector<2x8x1xf32>
    %22 = vector.broadcast %21 : vector<2x8x1xf32> to vector<2x8x8xf32>
    %23 = arith.mulf %18, %22 : vector<2x8x8xf32>
    "tpu.trace_start"() <{level = 10 : i32, message = "bts,bsd->btd"}> : () -> ()
    %cst_8 = arith.constant dense<0.000000e+00> : vector<2x8x64xf32>
    %24 = tpu.matmul %23, %10, %cst_8 {dimension_numbers = #tpu.dot_dimension_numbers<[2], [1], [1], [2], [0, 0, 0, 1, 1, 2], [0], [0]>} : vector<2x8x8xf32>, vector<2x8x64xf32>, vector<2x8x64xf32> -> vector<2x8x64xf32>
    "tpu.trace_stop"() : () -> ()
    %25 = vector.extract_strided_slice %4 {offsets = [0, 0, 64], sizes = [2, 8, 64], strides = [1, 1, 1]} : vector<2x8x768xf32> to vector<2x8x64xf32>
    %26 = vector.extract_strided_slice %4 {offsets = [0, 0, 320], sizes = [2, 8, 64], strides = [1, 1, 1]} : vector<2x8x768xf32> to vector<2x8x64xf32>
    %27 = vector.extract_strided_slice %4 {offsets = [0, 0, 576], sizes = [2, 8, 64], strides = [1, 1, 1]} : vector<2x8x768xf32> to vector<2x8x64xf32>
    "tpu.trace_start"() <{level = 10 : i32, message = "btd,bsd->bts"}> : () -> ()
    %cst_9 = arith.constant dense<0.000000e+00> : vector<2x8x8xf32>
    %28 = tpu.matmul %25, %26, %cst_9 {dimension_numbers = #tpu.dot_dimension_numbers<[2], [2], [1], [1], [0, 0, 0, 1, 1, 1], [0], [0]>} : vector<2x8x64xf32>, vector<2x8x64xf32>, vector<2x8x8xf32> -> vector<2x8x8xf32>
    %cst_10 = arith.constant 0xFF800000 : f32
    "tpu.trace_stop"() : () -> ()
    %29 = vector.broadcast %cst_10 : f32 to vector<2x8x8xf32>
    %30 = arith.select %7, %28, %29 : vector<2x8x8xi1>, vector<2x8x8xf32>
    %cst_11 = arith.constant dense<0xFF800000> : vector<2x8xf32>
    %31 = vector.multi_reduction <maximumf>, %30, %cst_11 [2] : vector<2x8x8xf32> to vector<2x8xf32>
    %32 = vector.shape_cast %31 : vector<2x8xf32> to vector<2x8x1xf32>
    %33 = vector.broadcast %32 : vector<2x8x1xf32> to vector<2x8x8xf32>
    %34 = arith.subf %30, %33 : vector<2x8x8xf32>
    %35 = math.exp %34 : vector<2x8x8xf32>
    %cst_12 = arith.constant dense<0.000000e+00> : vector<2x8xf32>
    %36 = vector.multi_reduction <add>, %35, %cst_12 [2] : vector<2x8x8xf32> to vector<2x8xf32>
    %37 = vector.shape_cast %36 : vector<2x8xf32> to vector<2x8x1xf32>
    %38 = tpu.reciprocal %37 {approx = true} : vector<2x8x1xf32> -> vector<2x8x1xf32>
    %39 = vector.broadcast %38 : vector<2x8x1xf32> to vector<2x8x8xf32>
    %40 = arith.mulf %35, %39 : vector<2x8x8xf32>
    "tpu.trace_start"() <{level = 10 : i32, message = "bts,bsd->btd"}> : () -> ()
    %cst_13 = arith.constant dense<0.000000e+00> : vector<2x8x64xf32>
    %41 = tpu.matmul %40, %27, %cst_13 {dimension_numbers = #tpu.dot_dimension_numbers<[2], [1], [1], [2], [0, 0, 0, 1, 1, 2], [0], [0]>} : vector<2x8x8xf32>, vector<2x8x64xf32>, vector<2x8x64xf32> -> vector<2x8x64xf32>
    "tpu.trace_stop"() : () -> ()
    %42 = vector.extract_strided_slice %4 {offsets = [0, 0, 128], sizes = [2, 8, 64], strides = [1, 1, 1]} : vector<2x8x768xf32> to vector<2x8x64xf32>
    %43 = vector.extract_strided_slice %4 {offsets = [0, 0, 384], sizes = [2, 8, 64], strides = [1, 1, 1]} : vector<2x8x768xf32> to vector<2x8x64xf32>
    %44 = vector.extract_strided_slice %4 {offsets = [0, 0, 640], sizes = [2, 8, 64], strides = [1, 1, 1]} : vector<2x8x768xf32> to vector<2x8x64xf32>
    "tpu.trace_start"() <{level = 10 : i32, message = "btd,bsd->bts"}> : () -> ()
    %cst_14 = arith.constant dense<0.000000e+00> : vector<2x8x8xf32>
    %45 = tpu.matmul %42, %43, %cst_14 {dimension_numbers = #tpu.dot_dimension_numbers<[2], [2], [1], [1], [0, 0, 0, 1, 1, 1], [0], [0]>} : vector<2x8x64xf32>, vector<2x8x64xf32>, vector<2x8x8xf32> -> vector<2x8x8xf32>
    %cst_15 = arith.constant 0xFF800000 : f32
    "tpu.trace_stop"() : () -> ()
    %46 = vector.broadcast %cst_15 : f32 to vector<2x8x8xf32>
    %47 = arith.select %7, %45, %46 : vector<2x8x8xi1>, vector<2x8x8xf32>
    %cst_16 = arith.constant dense<0xFF800000> : vector<2x8xf32>
    %48 = vector.multi_reduction <maximumf>, %47, %cst_16 [2] : vector<2x8x8xf32> to vector<2x8xf32>
    %49 = vector.shape_cast %48 : vector<2x8xf32> to vector<2x8x1xf32>
    %50 = vector.broadcast %49 : vector<2x8x1xf32> to vector<2x8x8xf32>
    %51 = arith.subf %47, %50 : vector<2x8x8xf32>
    %52 = math.exp %51 : vector<2x8x8xf32>
    %cst_17 = arith.constant dense<0.000000e+00> : vector<2x8xf32>
    %53 = vector.multi_reduction <add>, %52, %cst_17 [2] : vector<2x8x8xf32> to vector<2x8xf32>
    %54 = vector.shape_cast %53 : vector<2x8xf32> to vector<2x8x1xf32>
    %55 = tpu.reciprocal %54 {approx = true} : vector<2x8x1xf32> -> vector<2x8x1xf32>
    %56 = vector.broadcast %55 : vector<2x8x1xf32> to vector<2x8x8xf32>
    %57 = arith.mulf %52, %56 : vector<2x8x8xf32>
    "tpu.trace_start"() <{level = 10 : i32, message = "bts,bsd->btd"}> : () -> ()
    %cst_18 = arith.constant dense<0.000000e+00> : vector<2x8x64xf32>
    %58 = tpu.matmul %57, %44, %cst_18 {dimension_numbers = #tpu.dot_dimension_numbers<[2], [1], [1], [2], [0, 0, 0, 1, 1, 2], [0], [0]>} : vector<2x8x8xf32>, vector<2x8x64xf32>, vector<2x8x64xf32> -> vector<2x8x64xf32>
    "tpu.trace_stop"() : () -> ()
    %59 = vector.extract_strided_slice %4 {offsets = [0, 0, 192], sizes = [2, 8, 64], strides = [1, 1, 1]} : vector<2x8x768xf32> to vector<2x8x64xf32>
    %60 = vector.extract_strided_slice %4 {offsets = [0, 0, 448], sizes = [2, 8, 64], strides = [1, 1, 1]} : vector<2x8x768xf32> to vector<2x8x64xf32>
    %61 = vector.extract_strided_slice %4 {offsets = [0, 0, 704], sizes = [2, 8, 64], strides = [1, 1, 1]} : vector<2x8x768xf32> to vector<2x8x64xf32>
    "tpu.trace_start"() <{level = 10 : i32, message = "btd,bsd->bts"}> : () -> ()
    %cst_19 = arith.constant dense<0.000000e+00> : vector<2x8x8xf32>
    %62 = tpu.matmul %59, %60, %cst_19 {dimension_numbers = #tpu.dot_dimension_numbers<[2], [2], [1], [1], [0, 0, 0, 1, 1, 1], [0], [0]>} : vector<2x8x64xf32>, vector<2x8x64xf32>, vector<2x8x8xf32> -> vector<2x8x8xf32>
    %cst_20 = arith.constant 0xFF800000 : f32
    "tpu.trace_stop"() : () -> ()
    %63 = vector.broadcast %cst_20 : f32 to vector<2x8x8xf32>
    %64 = arith.select %7, %62, %63 : vector<2x8x8xi1>, vector<2x8x8xf32>
    %cst_21 = arith.constant dense<0xFF800000> : vector<2x8xf32>
    %65 = vector.multi_reduction <maximumf>, %64, %cst_21 [2] : vector<2x8x8xf32> to vector<2x8xf32>
    %66 = vector.shape_cast %65 : vector<2x8xf32> to vector<2x8x1xf32>
    %67 = vector.broadcast %66 : vector<2x8x1xf32> to vector<2x8x8xf32>
    %68 = arith.subf %64, %67 : vector<2x8x8xf32>
    %69 = math.exp %68 : vector<2x8x8xf32>
    %cst_22 = arith.constant dense<0.000000e+00> : vector<2x8xf32>
    %70 = vector.multi_reduction <add>, %69, %cst_22 [2] : vector<2x8x8xf32> to vector<2x8xf32>
    %71 = vector.shape_cast %70 : vector<2x8xf32> to vector<2x8x1xf32>
    %72 = tpu.reciprocal %71 {approx = true} : vector<2x8x1xf32> -> vector<2x8x1xf32>
    %73 = vector.broadcast %72 : vector<2x8x1xf32> to vector<2x8x8xf32>
    %74 = arith.mulf %69, %73 : vector<2x8x8xf32>
    "tpu.trace_start"() <{level = 10 : i32, message = "bts,bsd->btd"}> : () -> ()
    %cst_23 = arith.constant dense<0.000000e+00> : vector<2x8x64xf32>
    %75 = tpu.matmul %74, %61, %cst_23 {dimension_numbers = #tpu.dot_dimension_numbers<[2], [1], [1], [2], [0, 0, 0, 1, 1, 2], [0], [0]>} : vector<2x8x8xf32>, vector<2x8x64xf32>, vector<2x8x64xf32> -> vector<2x8x64xf32>
    "tpu.trace_stop"() : () -> ()
    %76 = tpu.concatenate %24, %41, %58, %75 in 2 : vector<2x8x64xf32>, vector<2x8x64xf32>, vector<2x8x64xf32>, vector<2x8x64xf32> -> vector<2x8x256xf32>
    %77 = vector.shape_cast %76 : vector<2x8x256xf32> to vector<16x256xf32>
    %c0_24 = arith.constant 0 : index
    %c0_25 = arith.constant 0 : index
    %78 = vector.load %arg3[%c0_24, %c0_25] : memref<256x184xf32, #tpu.memory_space<vmem>>, vector<256x184xf32>
    %cst_26 = arith.constant dense<0.000000e+00> : vector<16x184xf32>
    %79 = tpu.matmul %77, %78, %cst_26 {dimension_numbers = #tpu.dot_dimension_numbers<[1], [0], [0], [1], [0, 0, 1, 1], [], []>} : vector<16x256xf32>, vector<256x184xf32>, vector<16x184xf32> -> vector<16x184xf32>
    %c0_27 = arith.constant 0 : index
    %c0_28 = arith.constant 0 : index
    %80 = vector.load %arg4[%c0_27, %c0_28] : memref<1x184xf32, #tpu.memory_space<vmem>>, vector<1x184xf32>
    %81 = vector.broadcast %80 : vector<1x184xf32> to vector<16x184xf32>
    %82 = arith.addf %79, %81 : vector<16x184xf32>
    %83 = vector.shape_cast %82 : vector<16x184xf32> to vector<2x8x184xf32>
    %c0_29 = arith.constant 0 : index
    %c0_30 = arith.constant 0 : index
    %c0_31 = arith.constant 0 : index
    %84 = vector.load %arg5[%c0_29, %c0_30, %c0_31] : memref<2x8x184xf32, #tpu.memory_space<vmem>>, vector<2x8x184xf32>
    tpu.vector_store %arg5[%c0_29, %c0_30, %c0_31], %83 {strides = array<i32>} : memref<2x8x184xf32, #tpu.memory_space<vmem>>, vector<2x8x184xf32>,
    return
  }
  func.func @transform_0(%arg0: i32) -> (i32, i32, i32) {
    %c0_i32 = arith.constant 0 : i32
    %c0_i32_0 = arith.constant 0 : i32
    %c0_i32_1 = arith.constant 0 : i32
    return %arg0, %c0_i32, %c0_i32_0 : i32, i32, i32
  }
  func.func @transform_1(%arg0: i32) -> (i32, i32) {
    %c0_i32 = arith.constant 0 : i32
    %c0_i32_0 = arith.constant 0 : i32
    %c0_i32_1 = arith.constant 0 : i32
    return %c0_i32, %c0_i32_0 : i32, i32
  }
  func.func @transform_2(%arg0: i32) -> (i32, i32) {
    %c0_i32 = arith.constant 0 : i32
    %c0_i32_0 = arith.constant 0 : i32
    %c0_i32_1 = arith.constant 0 : i32
    return %c0_i32, %c0_i32_0 : i32, i32
  }
  func.func @transform_3(%arg0: i32) -> (i32, i32) {
    %c0_i32 = arith.constant 0 : i32
    %c0_i32_0 = arith.constant 0 : i32
    %c0_i32_1 = arith.constant 0 : i32
    return %c0_i32, %c0_i32_0 : i32, i32
  }
  func.func @transform_4(%arg0: i32) -> (i32, i32, i32) {
    %c0_i32 = arith.constant 0 : i32
    %c0_i32_0 = arith.constant 0 : i32
    %c0_i32_1 = arith.constant 0 : i32
    return %arg0, %c0_i32, %c0_i32_0 : i32, i32, i32
  }
}

</mosaic_0001>

<llo_original>
// kernel: tpu_custom_call.1
$region0: #{tpu_custom_call.1}
  #allocation0 [shape = 'u32[]', space=smem, size = 0x4, offset = 0x4, fixed_abs, tag = 'smem constant byte address 0x4 - core index']
  #allocation1 [shape = 'u32[144,128]{1,0:T(1,128)}', space=vmem, size = 0x12000, scoped, tag = 'internal scratch']
  %s0 = inlined_call_operand.vmem [shape: f32[2,8,184], index: 0, kind: input, shape index: {}]
  %s1 = inlined_call_operand.hbm [shape: f32[184,768], index: 1, kind: input, shape index: {}]
  %s2 = inlined_call_operand.vmem [shape: f32[256,184], index: 2, kind: input, shape index: {}]
  %s3 = inlined_call_operand.vmem [shape: f32[1,184], index: 3, kind: input, shape index: {}]
  %s4 = inlined_call_operand.hbm [shape: f32[2,8,184], index: 4, kind: output, shape index: {}]
  %s5 = sld [smem:[#allocation0]]
  $region30: #{tpu_custom_call.1} parent=0
    _
  %s7 = ssub.s32 1, %s5
  %s8 = scalar_select 0, %s7, %s5
  $region1: #{tpu_custom_call.1} parent=0
    #allocation2 [shape = 'u8[565248]{0}', space=vmem, size = 0x8a000, scoped, tag = 'input window, operand 1, single buffered']
    #allocation3 [shape = 's32[1]{0}', space=sflag, size = 0x4, scoped, tag = 'scoped memory for tpu_custom_call.1']
    #allocation4 [shape = 's32[1]{0}', space=sflag, size = 0x4, scoped, tag = 'scoped memory for tpu_custom_call.1']
    #allocation5 [shape = 'u8[16384]{0}', space=vmem, size = 0x4000, scoped, tag = 'output window, operand 0, single buffered']
    %9 = vsyncpa [#allocation3], 0
    %10 = vsyncpa [#allocation4], 0
    // Predicated region
    $region2: #{tpu_custom_call.1} parent=1 // pred_check
      _
    $region3: #{tpu_custom_call.1} parent=1 // pred_check_branch
      %12 = sbr.rel (0) target = $region5
    $region4: #{tpu_custom_call.1} parent=1 // pred_region
      _
    $region5: #{tpu_custom_call.1} parent=1 // pred_fallthru
      _
    // Predicated region
    $region6: #{tpu_custom_call.1} parent=1 // pred_check
      _
    $region7: #{tpu_custom_call.1} parent=1 // pred_check_branch
      %14 = sbr.rel (0) target = $region9
    $region8: #{tpu_custom_call.1} parent=1 // pred_region
      %s16 = ssub.s32 17664, 17664
      %17 = vsyncadd [#allocation3], %s16
      %s18 = sshll.u32 [#allocation2], 4
      %s19 = int_to_ptr.vmem [resolvable:$true] %s18
      %24 = dma.hbm_to_vmem [thread:$0]  %s1, 17664, %s19, [#allocation3], 768, 768, 48
    $region9: #{tpu_custom_call.1} parent=1 // pred_fallthru
      _
    // Predicated region
    $region10: #{tpu_custom_call.1} parent=1 // pred_check
      _
    $region11: #{tpu_custom_call.1} parent=1 // pred_check_branch
      %26 = sbr.rel (0) target = $region13
    $region12: #{tpu_custom_call.1} parent=1 // pred_region
      _
    $region13: #{tpu_custom_call.1} parent=1 // pred_fallthru
      _
    // Predicated region
    $region14: #{tpu_custom_call.1} parent=1 // pred_check
      _
    $region15: #{tpu_custom_call.1} parent=1 // pred_check_branch
      %28 = sbr.rel (0) target = $region17
    $region16: #{tpu_custom_call.1} parent=1 // pred_region
      _
    $region17: #{tpu_custom_call.1} parent=1 // pred_fallthru
      _
    // Predicated region
    $region18: #{tpu_custom_call.1} parent=1 // pred_check
      _
    $region19: #{tpu_custom_call.1} parent=1 // pred_check_branch
      %30 = sbr.rel (0) target = $region21
    $region20: #{tpu_custom_call.1} parent=1 // pred_region
      %31 = dma.done [#allocation3], 17664
    $region21: #{tpu_custom_call.1} parent=1 // pred_fallthru
      _
    %v32 = vld [vmem:[%s0] sm:$0xff]
    %v33 = vld [vmem:[%s0 + $0x8] sm:$0xff]
    %v34 = vld [vmem:[%s0 + $0x10] sm:$0xff]
    %v35 = vld [vmem:[%s0 + $0x18] sm:$0xff]
    %v36 = vld [vmem:[#allocation2] sm:$0xff]
    %v37 = vld [vmem:[#allocation2 + $0x8] sm:$0xff]
    %v38 = vld [vmem:[#allocation2 + $0x10] sm:$0xff]
    %v39 = vld [vmem:[#allocation2 + $0x18] sm:$0xff]
    %v40 = vld [vmem:[#allocation2 + $0x20] sm:$0xff]
    %v41 = vld [vmem:[#allocation2 + $0x28] sm:$0xff]
    %v42 = vld [vmem:[#allocation2 + $0x30] sm:$0xff]
    %v43 = vld [vmem:[#allocation2 + $0x38] sm:$0xff]
    %v44 = vld [vmem:[#allocation2 + $0x40] sm:$0xff]
    %v45 = vld [vmem:[#allocation2 + $0x48] sm:$0xff]
    %v46 = vld [vmem:[#allocation2 + $0x50] sm:$0xff]
    %v47 = vld [vmem:[#allocation2 + $0x58] sm:$0xff]
    %v48 = vld [vmem:[#allocation2 + $0x60] sm:$0xff]
    %v49 = vld [vmem:[#allocation2 + $0x68] sm:$0xff]
    %v50 = vld [vmem:[#allocation2 + $0x70] sm:$0xff]
    %v51 = vld [vmem:[#allocation2 + $0x78] sm:$0xff]
    %v52 = vld [vmem:[#allocation2 + $0x80] sm:$0xff]
    %v53 = vld [vmem:[#allocation2 + $0x88] sm:$0xff]
    %v54 = vld [vmem:[#allocation2 + $0x90] sm:$0xff]
    %v55 = vld [vmem:[#allocation2 + $0x98] sm:$0xff]
    %v56 = vld [vmem:[#allocation2 + $0xa0] sm:$0xff]
    %v57 = vld [vmem:[#allocation2 + $0xa8] sm:$0xff]
    %v58 = vld [vmem:[#allocation2 + $0xb0] sm:$0xff]
    %v59 = vld [vmem:[#allocation2 + $0xb8] sm:$0xff]
    %v60 = vld [vmem:[#allocation2 + $0xc0] sm:$0xff]
    %v61 = vld [vmem:[#allocation2 + $0xc8] sm:$0xff]
    %v62 = vld [vmem:[#allocation2 + $0xd0] sm:$0xff]
    %v63 = vld [vmem:[#allocation2 + $0xd8] sm:$0xff]
    %v64 = vld [vmem:[#allocation2 + $0xe0] sm:$0xff]
    %v65 = vld [vmem:[#allocation2 + $0xe8] sm:$0xff]
    %v66 = vld [vmem:[#allocation2 + $0xf0] sm:$0xff]
    %v67 = vld [vmem:[#allocation2 + $0xf8] sm:$0xff]
    %v68 = vld [vmem:[#allocation2 + $0x100] sm:$0xff]
    %v69 = vld [vmem:[#allocation2 + $0x108] sm:$0xff]
    %v70 = vld [vmem:[#allocation2 + $0x110] sm:$0xff]
    %v71 = vld [vmem:[#allocation2 + $0x118] sm:$0xff]
    %v72 = vld [vmem:[#allocation2 + $0x120] sm:$0xff]
    %v73 = vld [vmem:[#allocation2 + $0x128] sm:$0xff]
    %v74 = vld [vmem:[#allocation2 + $0x130] sm:$0xff]
    %v75 = vld [vmem:[#allocation2 + $0x138] sm:$0xff]
    %v76 = vld [vmem:[#allocation2 + $0x140] sm:$0xff]
    %v77 = vld [vmem:[#allocation2 + $0x148] sm:$0xff]
    %v78 = vld [vmem:[#allocation2 + $0x150] sm:$0xff]
    %v79 = vld [vmem:[#allocation2 + $0x158] sm:$0xff]
    %v80 = vld [vmem:[#allocation2 + $0x160] sm:$0xff]
    %v81 = vld [vmem:[#allocation2 + $0x168] sm:$0xff]
    %v82 = vld [vmem:[#allocation2 + $0x170] sm:$0xff]
    %v83 = vld [vmem:[#allocation2 + $0x178] sm:$0xff]
    %v84 = vld [vmem:[#allocation2 + $0x180] sm:$0xff]
    %v85 = vld [vmem:[#allocation2 + $0x188] sm:$0xff]
    %v86 = vld [vmem:[#allocation2 + $0x190] sm:$0xff]
    %v87 = vld [vmem:[#allocation2 + $0x198] sm:$0xff]
    %v88 = vld [vmem:[#allocation2 + $0x1a0] sm:$0xff]
    %v89 = vld [vmem:[#allocation2 + $0x1a8] sm:$0xff]
    %v90 = vld [vmem:[#allocation2 + $0x1b0] sm:$0xff]
    %v91 = vld [vmem:[#allocation2 + $0x1b8] sm:$0xff]
    %v92 = vld [vmem:[#allocation2 + $0x1c0] sm:$0xff]
    %v93 = vld [vmem:[#allocation2 + $0x1c8] sm:$0xff]
    %v94 = vld [vmem:[#allocation2 + $0x1d0] sm:$0xff]
    %v95 = vld [vmem:[#allocation2 + $0x1d8] sm:$0xff]
    %v96 = vld [vmem:[#allocation2 + $0x1e0] sm:$0xff]
    %v97 = vld [vmem:[#allocation2 + $0x1e8] sm:$0xff]
    %v98 = vld [vmem:[#allocation2 + $0x1f0] sm:$0xff]
    %v99 = vld [vmem:[#allocation2 + $0x1f8] sm:$0xff]
    %v100 = vld [vmem:[#allocation2 + $0x200] sm:$0xff]
    %v101 = vld [vmem:[#allocation2 + $0x208] sm:$0xff]
    %v102 = vld [vmem:[#allocation2 + $0x210] sm:$0xff]
    %v103 = vld [vmem:[#allocation2 + $0x218] sm:$0xff]
    %v104 = vld [vmem:[#allocation2 + $0x220] sm:$0xff]
    %v105 = vld [vmem:[#allocation2 + $0x228] sm:$0xff]
    %v106 = vld [vmem:[#allocation2 + $0x230] sm:$0xff]
    %v107 = vld [vmem:[#allocation2 + $0x238] sm:$0xff]
    %v108 = vld [vmem:[#allocation2 + $0x240] sm:$0xff]
    %v109 = vld [vmem:[#allocation2 + $0x248] sm:$0xff]
    %v110 = vld [vmem:[#allocation2 + $0x250] sm:$0xff]
    %v111 = vld [vmem:[#allocation2 + $0x258] sm:$0xff]
    %v112 = vld [vmem:[#allocation2 + $0x260] sm:$0xff]
    %v113 = vld [vmem:[#allocation2 + $0x268] sm:$0xff]
    %v114 = vld [vmem:[#allocation2 + $0x270] sm:$0xff]
    %v115 = vld [vmem:[#allocation2 + $0x278] sm:$0xff]
    %v116 = vld [vmem:[#allocation2 + $0x280] sm:$0xff]
    %v117 = vld [vmem:[#allocation2 + $0x288] sm:$0xff]
    %v118 = vld [vmem:[#allocation2 + $0x290] sm:$0xff]
    %v119 = vld [vmem:[#allocation2 + $0x298] sm:$0xff]
    %v120 = vld [vmem:[#allocation2 + $0x2a0] sm:$0xff]
    %v121 = vld [vmem:[#allocation2 + $0x2a8] sm:$0xff]
    %v122 = vld [vmem:[#allocation2 + $0x2b0] sm:$0xff]
    %v123 = vld [vmem:[#allocation2 + $0x2b8] sm:$0xff]
    %v124 = vld [vmem:[#allocation2 + $0x2c0] sm:$0xff]
    %v125 = vld [vmem:[#allocation2 + $0x2c8] sm:$0xff]
    %v126 = vld [vmem:[#allocation2 + $0x2d0] sm:$0xff]
    %v127 = vld [vmem:[#allocation2 + $0x2d8] sm:$0xff]
    %v128 = vld [vmem:[#allocation2 + $0x2e0] sm:$0xff]
    %v129 = vld [vmem:[#allocation2 + $0x2e8] sm:$0xff]
    %v130 = vld [vmem:[#allocation2 + $0x2f0] sm:$0xff]
    %v131 = vld [vmem:[#allocation2 + $0x2f8] sm:$0xff]
    %v132 = vld [vmem:[#allocation2 + $0x300] sm:$0xff]
    %v133 = vld [vmem:[#allocation2 + $0x308] sm:$0xff]
    %v134 = vld [vmem:[#allocation2 + $0x310] sm:$0xff]
    %v135 = vld [vmem:[#allocation2 + $0x318] sm:$0xff]
    %v136 = vld [vmem:[#allocation2 + $0x320] sm:$0xff]
    %v137 = vld [vmem:[#allocation2 + $0x328] sm:$0xff]
    %v138 = vld [vmem:[#allocation2 + $0x330] sm:$0xff]
    %v139 = vld [vmem:[#allocation2 + $0x338] sm:$0xff]
    %v140 = vld [vmem:[#allocation2 + $0x340] sm:$0xff]
    %v141 = vld [vmem:[#allocation2 + $0x348] sm:$0xff]
    %v142 = vld [vmem:[#allocation2 + $0x350] sm:$0xff]
    %v143 = vld [vmem:[#allocation2 + $0x358] sm:$0xff]
    %v144 = vld [vmem:[#allocation2 + $0x360] sm:$0xff]
    %v145 = vld [vmem:[#allocation2 + $0x368] sm:$0xff]
    %v146 = vld [vmem:[#allocation2 + $0x370] sm:$0xff]
    %v147 = vld [vmem:[#allocation2 + $0x378] sm:$0xff]
    %v148 = vld [vmem:[#allocation2 + $0x380] sm:$0xff]
    %v149 = vld [vmem:[#allocation2 + $0x388] sm:$0xff]
    %v150 = vld [vmem:[#allocation2 + $0x390] sm:$0xff]
    %v151 = vld [vmem:[#allocation2 + $0x398] sm:$0xff]
    %v152 = vld [vmem:[#allocation2 + $0x3a0] sm:$0xff]
    %v153 = vld [vmem:[#allocation2 + $0x3a8] sm:$0xff]
    %v154 = vld [vmem:[#allocation2 + $0x3b0] sm:$0xff]
    %v155 = vld [vmem:[#allocation2 + $0x3b8] sm:$0xff]
    %v156 = vld [vmem:[#allocation2 + $0x3c0] sm:$0xff]
    %v157 = vld [vmem:[#allocation2 + $0x3c8] sm:$0xff]
    %v158 = vld [vmem:[#allocation2 + $0x3d0] sm:$0xff]
    %v159 = vld [vmem:[#allocation2 + $0x3d8] sm:$0xff]
    %v160 = vld [vmem:[#allocation2 + $0x3e0] sm:$0xff]
    %v161 = vld [vmem:[#allocation2 + $0x3e8] sm:$0xff]
    %v162 = vld [vmem:[#allocation2 + $0x3f0] sm:$0xff]
    %v163 = vld [vmem:[#allocation2 + $0x3f8] sm:$0xff]
    %v164 = vld [vmem:[#allocation2 + $0x400] sm:$0xff]
    %v165 = vld [vmem:[#allocation2 + $0x408] sm:$0xff]
    %v166 = vld [vmem:[#allocation2 + $0x410] sm:$0xff]
    %v167 = vld [vmem:[#allocation2 + $0x418] sm:$0xff]
    %v168 = vld [vmem:[#allocation2 + $0x420] sm:$0xff]
    %v169 = vld [vmem:[#allocation2 + $0x428] sm:$0xff]
    %v170 = vld [vmem:[#allocation2 + $0x430] sm:$0xff]
    %v171 = vld [vmem:[#allocation2 + $0x438] sm:$0xff]
    %v172 = vld [vmem:[#allocation2 + $0x440] sm:$0xff]
    %v173 = vld [vmem:[#allocation2 + $0x448] sm:$0xff]
    %vm174 = vcmask 457728
    %v176 = vsel %vm174, %v33, 0
    %v179 = vsel %vm174, %v35, 0
    %181 = vmatprep.subr.mxu0 %v127
    %182 = vmatpush1.msra.mxu0 %v126
    %183 = vmatprep.subr.mxu0 %v121
    %184 = vmatpush1.msra.mxu0 %v120
    %185 = vmatprep.subr.mxu0 %v115
    %186 = vmatpush1.msra.mxu0 %v114
    %187 = vmatprep.subr.mxu0 %v109
    %188 = vmatpush1.msra.mxu0 %v108
    %189 = vmatprep.subr.mxu0 %v103
    %190 = vmatpush1.msra.mxu0 %v102
    %191 = vmatprep.subr.mxu0 %v97
    %192 = vmatpush1.msra.mxu0 %v96
    %193 = vmatprep.subr.mxu0 %v91
    %194 = vmatpush1.msra.mxu0 %v90
    %195 = vmatprep.subr.mxu0 %v85
    %196 = vmatpush1.msra.mxu0 %v84
    %197 = vmatprep.subr.mxu0 %v79
    %198 = vmatpush1.msra.mxu0 %v78
    %199 = vmatprep.subr.mxu0 %v73
    %200 = vmatpush1.msra.mxu0 %v72
    %201 = vmatprep.subr.mxu0 %v67
    %202 = vmatpush1.msra.mxu0 %v66
    %203 = vmatprep.subr.mxu0 %v61
    %204 = vmatpush1.msra.mxu0 %v60
    %205 = vmatprep.subr.mxu0 %v55
    %206 = vmatpush1.msra.mxu0 %v54
    %207 = vmatprep.subr.mxu0 %v49
    %208 = vmatpush1.msra.mxu0 %v48
    %209 = vmatprep.subr.mxu0 %v43
    %210 = vmatpush1.msra.mxu0 %v42
    %211 = vmatprep.subr.mxu0 %v37
    %212 = vmatpush1.msra.mxu0 %v36
    %213 = vmatprep.subr.mxu0 0.0
    %214 = vmatpush2.msra.mxu0 0.0
    %215 = vmatprep.subr.mxu0 0.0
    %216 = vmatpush2.msra.mxu0 0.0
    %217 = vmatprep.subr.mxu0 0.0
    %218 = vmatpush2.msra.mxu0 0.0
    %219 = vmatprep.subr.mxu0 0.0
    %220 = vmatpush2.msra.mxu0 0.0
    %221 = vmatprep.subr.mxu0 0.0
    %222 = vmatpush2.msra.mxu0 0.0
    %223 = vmatprep.subr.mxu0 0.0
    %224 = vmatpush2.msra.mxu0 0.0
    %225 = vmatprep.subr.mxu0 0.0
    %226 = vmatpush2.msra.mxu0 0.0
    %227 = vmatprep.subr.mxu0 0.0
    %228 = vmatpush2.msra.mxu0 0.0
    %229 = vmatprep.subr.mxu0 0.0
    %230 = vmatpush2.msra.mxu0 0.0
    %231 = vmatprep.subr.mxu0 %v169
    %232 = vmatpush2.msra.mxu0 %v168
    %233 = vmatprep.subr.mxu0 %v163
    %234 = vmatpush2.msra.mxu0 %v162
    %235 = vmatprep.subr.mxu0 %v157
    %236 = vmatpush2.msra.mxu0 %v156
    %237 = vmatprep.subr.mxu0 %v151
    %238 = vmatpush2.msra.mxu0 %v150
    %239 = vmatprep.subr.mxu0 %v145
    %240 = vmatpush2.msra.mxu0 %v144
    %241 = vmatprep.subr.mxu0 %v139
    %242 = vmatpush2.msra.mxu0 %v138
    %243 = vmatprep.subr.mxu0 %v133
    %244 = vmatpush2.msra.mxu0 %v132
    %245 = vmatprep.mubr.f32.mxu0 %v176
    %246 = vmatmul.mubr.f32.gmra.mxu0 %v32
    %v247 = vpop.f32.mrf.mxu0
    %v248 = vadd.f32 0.0, %v247
    %v249 = vpop.f32.mrf.mxu0
    %v250 = vadd.f32 0.0, %v249
    %251 = vmatprep.mubr.f32.mxu0 %v179
    %252 = vmatmul.mubr.f32.gmra.mxu0 %v34
    %v253 = vpop.f32.mrf.mxu0
    %v254 = vadd.f32 0.0, %v253
    %v255 = vpop.f32.mrf.mxu0
    %v256 = vadd.f32 0.0, %v255
    %257 = vdwg.mxu0
    %258 = vmatprep.subr.mxu0 %v129
    %259 = vmatpush1.msra.mxu0 %v128
    %260 = vmatprep.subr.mxu0 %v123
    %261 = vmatpush1.msra.mxu0 %v122
    %262 = vmatprep.subr.mxu0 %v117
    %263 = vmatpush1.msra.mxu0 %v116
    %264 = vmatprep.subr.mxu0 %v111
    %265 = vmatpush1.msra.mxu0 %v110
    %266 = vmatprep.subr.mxu0 %v105
    %267 = vmatpush1.msra.mxu0 %v104
    %268 = vmatprep.subr.mxu0 %v99
    %269 = vmatpush1.msra.mxu0 %v98
    %270 = vmatprep.subr.mxu0 %v93
    %271 = vmatpush1.msra.mxu0 %v92
    %272 = vmatprep.subr.mxu0 %v87
    %273 = vmatpush1.msra.mxu0 %v86
    %274 = vmatprep.subr.mxu0 %v81
    %275 = vmatpush1.msra.mxu0 %v80
    %276 = vmatprep.subr.mxu0 %v75
    %277 = vmatpush1.msra.mxu0 %v74
    %278 = vmatprep.subr.mxu0 %v69
    %279 = vmatpush1.msra.mxu0 %v68
    %280 = vmatprep.subr.mxu0 %v63
    %281 = vmatpush1.msra.mxu0 %v62
    %282 = vmatprep.subr.mxu0 %v57
    %283 = vmatpush1.msra.mxu0 %v56
    %284 = vmatprep.subr.mxu0 %v51
    %285 = vmatpush1.msra.mxu0 %v50
    %286 = vmatprep.subr.mxu0 %v45
    %287 = vmatpush1.msra.mxu0 %v44
    %288 = vmatprep.subr.mxu0 %v39
    %289 = vmatpush1.msra.mxu0 %v38
    %290 = vmatprep.subr.mxu0 0.0
    %291 = vmatpush2.msra.mxu0 0.0
    %292 = vmatprep.subr.mxu0 0.0
    %293 = vmatpush2.msra.mxu0 0.0
    %294 = vmatprep.subr.mxu0 0.0
    %295 = vmatpush2.msra.mxu0 0.0
    %296 = vmatprep.subr.mxu0 0.0
    %297 = vmatpush2.msra.mxu0 0.0
    %298 = vmatprep.subr.mxu0 0.0
    %299 = vmatpush2.msra.mxu0 0.0
    %300 = vmatprep.subr.mxu0 0.0
    %301 = vmatpush2.msra.mxu0 0.0
    %302 = vmatprep.subr.mxu0 0.0
    %303 = vmatpush2.msra.mxu0 0.0
    %304 = vmatprep.subr.mxu0 0.0
    %305 = vmatpush2.msra.mxu0 0.0
    %306 = vmatprep.subr.mxu0 0.0
    %307 = vmatpush2.msra.mxu0 0.0
    %308 = vmatprep.subr.mxu0 %v171
    %309 = vmatpush2.msra.mxu0 %v170
    %310 = vmatprep.subr.mxu0 %v165
    %311 = vmatpush2.msra.mxu0 %v164
    %312 = vmatprep.subr.mxu0 %v159
    %313 = vmatpush2.msra.mxu0 %v158
    %314 = vmatprep.subr.mxu0 %v153
    %315 = vmatpush2.msra.mxu0 %v152
    %316 = vmatprep.subr.mxu0 %v147
    %317 = vmatpush2.msra.mxu0 %v146
    %318 = vmatprep.subr.mxu0 %v141
    %319 = vmatpush2.msra.mxu0 %v140
    %320 = vmatprep.subr.mxu0 %v135
    %321 = vmatpush2.msra.mxu0 %v134
    %322 = vmatprep.mubr.f32.mxu0 %v176
    %323 = vmatmul.mubr.f32.gmra.mxu0 %v32
    %v324 = vpop.f32.mrf.mxu0
    %v325 = vadd.f32 0.0, %v324
    %v326 = vpop.f32.mrf.mxu0
    %v327 = vadd.f32 0.0, %v326
    %328 = vmatprep.mubr.f32.mxu0 %v179
    %329 = vmatmul.mubr.f32.gmra.mxu0 %v34
    %v330 = vpop.f32.mrf.mxu0
    %v331 = vadd.f32 0.0, %v330
    %v332 = vpop.f32.mrf.mxu0
    %v333 = vadd.f32 0.0, %v332
    %334 = vdwg.mxu0
    %335 = vmatprep.subr.mxu0 %v131
    %336 = vmatpush1.msra.mxu0 %v130
    %337 = vmatprep.subr.mxu0 %v125
    %338 = vmatpush1.msra.mxu0 %v124
    %339 = vmatprep.subr.mxu0 %v119
    %340 = vmatpush1.msra.mxu0 %v118
    %341 = vmatprep.subr.mxu0 %v113
    %342 = vmatpush1.msra.mxu0 %v112
    %343 = vmatprep.subr.mxu0 %v107
    %344 = vmatpush1.msra.mxu0 %v106
    %345 = vmatprep.subr.mxu0 %v101
    %346 = vmatpush1.msra.mxu0 %v100
    %347 = vmatprep.subr.mxu0 %v95
    %348 = vmatpush1.msra.mxu0 %v94
    %349 = vmatprep.subr.mxu0 %v89
    %350 = vmatpush1.msra.mxu0 %v88
    %351 = vmatprep.subr.mxu0 %v83
    %352 = vmatpush1.msra.mxu0 %v82
    %353 = vmatprep.subr.mxu0 %v77
    %354 = vmatpush1.msra.mxu0 %v76
    %355 = vmatprep.subr.mxu0 %v71
    %356 = vmatpush1.msra.mxu0 %v70
    %357 = vmatprep.subr.mxu0 %v65
    %358 = vmatpush1.msra.mxu0 %v64
    %359 = vmatprep.subr.mxu0 %v59
    %360 = vmatpush1.msra.mxu0 %v58
    %361 = vmatprep.subr.mxu0 %v53
    %362 = vmatpush1.msra.mxu0 %v52
    %363 = vmatprep.subr.mxu0 %v47
    %364 = vmatpush1.msra.mxu0 %v46
    %365 = vmatprep.subr.mxu0 %v41
    %366 = vmatpush1.msra.mxu0 %v40
    %367 = vmatprep.subr.mxu0 0.0
    %368 = vmatpush2.msra.mxu0 0.0
    %369 = vmatprep.subr.mxu0 0.0
    %370 = vmatpush2.msra.mxu0 0.0
    %371 = vmatprep.subr.mxu0 0.0
    %372 = vmatpush2.msra.mxu0 0.0
    %373 = vmatprep.subr.mxu0 0.0
    %374 = vmatpush2.msra.mxu0 0.0
    %375 = vmatprep.subr.mxu0 0.0
    %376 = vmatpush2.msra.mxu0 0.0
    %377 = vmatprep.subr.mxu0 0.0
    %378 = vmatpush2.msra.mxu0 0.0
    %379 = vmatprep.subr.mxu0 0.0
    %380 = vmatpush2.msra.mxu0 0.0
    %381 = vmatprep.subr.mxu0 0.0
    %382 = vmatpush2.msra.mxu0 0.0
    %383 = vmatprep.subr.mxu0 0.0
    %384 = vmatpush2.msra.mxu0 0.0
    %385 = vmatprep.subr.mxu0 %v173
    %386 = vmatpush2.msra.mxu0 %v172
    %387 = vmatprep.subr.mxu0 %v167
    %388 = vmatpush2.msra.mxu0 %v166
    %389 = vmatprep.subr.mxu0 %v161
    %390 = vmatpush2.msra.mxu0 %v160
    %391 = vmatprep.subr.mxu0 %v155
    %392 = vmatpush2.msra.mxu0 %v154
    %393 = vmatprep.subr.mxu0 %v149
    %394 = vmatpush2.msra.mxu0 %v148
    %395 = vmatprep.subr.mxu0 %v143
    %396 = vmatpush2.msra.mxu0 %v142
    %397 = vmatprep.subr.mxu0 %v137
    %398 = vmatpush2.msra.mxu0 %v136
    %399 = vmatprep.mubr.f32.mxu0 %v176
    %400 = vmatmul.mubr.f32.gmra.mxu0 %v32
    %v401 = vpop.f32.mrf.mxu0
    %v402 = vadd.f32 0.0, %v401
    %v403 = vpop.f32.mrf.mxu0
    %v404 = vadd.f32 0.0, %v403
    %405 = vmatprep.mubr.f32.mxu0 %v179
    %406 = vmatmul.mubr.f32.gmra.mxu0 %v34
    %v407 = vpop.f32.mrf.mxu0
    %v408 = vadd.f32 0.0, %v407
    %v409 = vpop.f32.mrf.mxu0
    %v410 = vadd.f32 0.0, %v409
    %411 = vdwg.mxu0
    %v412 = vlaneseq
    %v413 = vshrl.u32 %v412, 7
    %v414 = vlaneseq
    %v415 = vand.u32 %v414, 127
    %vm416 = vcmp.le.s32.totalorder %v415, %v413
    %vm417 = vcmask 523264
    %v419 = vsel %vm417, %v248, 0
    %v422 = vsel %vm417, %v325, 0
    %424 = vmatprep.subr.mxu0 0.0
    %425 = vmatpush1.xpose.msra.mxu0 0.0
    %426 = vmatprep.subr.mxu0 0.0
    %427 = vmatpush1.xpose.msra.mxu0 0.0
    %428 = vmatprep.subr.mxu0 0.0
    %429 = vmatpush1.xpose.msra.mxu0 0.0
    %430 = vmatprep.subr.mxu0 0.0
    %431 = vmatpush1.xpose.msra.mxu0 0.0
    %432 = vmatprep.subr.mxu0 0.0
    %433 = vmatpush1.xpose.msra.mxu0 0.0
    %434 = vmatprep.subr.mxu0 0.0
    %435 = vmatpush1.xpose.msra.mxu0 0.0
    %436 = vmatprep.subr.mxu0 0.0
    %437 = vmatpush1.xpose.msra.mxu0 0.0
    %438 = vmatprep.subr.mxu0 0.0
    %439 = vmatpush1.xpose.msra.mxu0 0.0
    %440 = vmatprep.subr.mxu0 0.0
    %441 = vmatpush1.xpose.msra.mxu0 0.0
    %442 = vmatprep.subr.mxu0 0.0
    %443 = vmatpush1.xpose.msra.mxu0 0.0
    %444 = vmatprep.subr.mxu0 0.0
    %445 = vmatpush1.xpose.msra.mxu0 0.0
    %446 = vmatprep.subr.mxu0 0.0
    %447 = vmatpush1.xpose.msra.mxu0 0.0
    %448 = vmatprep.subr.mxu0 0.0
    %449 = vmatpush1.xpose.msra.mxu0 0.0
    %450 = vmatprep.subr.mxu0 0.0
    %451 = vmatpush1.xpose.msra.mxu0 0.0
    %452 = vmatprep.subr.mxu0 0.0
    %453 = vmatpush1.xpose.msra.mxu0 0.0
    %454 = vmatprep.subr.mxu0 0.0
    %455 = vmatpush1.xpose.msra.mxu0 %v422
    %456 = vmatprep.subr.mxu0 0.0
    %457 = vmatpush2.xpose.msra.mxu0 0.0
    %458 = vmatprep.subr.mxu0 0.0
    %459 = vmatpush2.xpose.msra.mxu0 0.0
    %460 = vmatprep.subr.mxu0 0.0
    %461 = vmatpush2.xpose.msra.mxu0 0.0
    %462 = vmatprep.subr.mxu0 0.0
    %463 = vmatpush2.xpose.msra.mxu0 0.0
    %464 = vmatprep.subr.mxu0 0.0
    %465 = vmatpush2.xpose.msra.mxu0 0.0
    %466 = vmatprep.subr.mxu0 0.0
    %467 = vmatpush2.xpose.msra.mxu0 0.0
    %468 = vmatprep.subr.mxu0 0.0
    %469 = vmatpush2.xpose.msra.mxu0 0.0
    %470 = vmatprep.subr.mxu0 0.0
    %471 = vmatpush2.xpose.msra.mxu0 0.0
    %472 = vmatprep.subr.mxu0 0.0
    %473 = vmatpush2.xpose.msra.mxu0 0.0
    %474 = vmatprep.subr.mxu0 0.0
    %475 = vmatpush2.xpose.msra.mxu0 0.0
    %476 = vmatprep.subr.mxu0 0.0
    %477 = vmatpush2.xpose.msra.mxu0 0.0
    %478 = vmatprep.subr.mxu0 0.0
    %479 = vmatpush2.xpose.msra.mxu0 0.0
    %480 = vmatprep.subr.mxu0 0.0
    %481 = vmatpush2.xpose.msra.mxu0 0.0
    %482 = vmatprep.subr.mxu0 0.0
    %483 = vmatpush2.xpose.msra.mxu0 0.0
    %484 = vmatprep.subr.mxu0 0.0
    %485 = vmatpush2.xpose.msra.mxu0 0.0
    %486 = vmatprep.subr.mxu0 0.0
    %487 = vmatpush2.xpose.msra.mxu0 0.0
    %488 = vmatprep.mubr.f32.mxu0 0.0
    %489 = vmatmul.mubr.f32.gmra.mxu0 %v419
    %v490 = vpop.f32.mrf.mxu0
    %v491 = vadd.f32 0.0, %v490
    %v492 = vpop.f32.mrf.mxu0
    %493 = vdwg.mxu0
    %v495 = vsel %vm417, %v254, 0
    %v498 = vsel %vm417, %v331, 0
    %500 = vmatprep.subr.mxu0 0.0
    %501 = vmatpush1.xpose.msra.mxu0 0.0
    %502 = vmatprep.subr.mxu0 0.0
    %503 = vmatpush1.xpose.msra.mxu0 0.0
    %504 = vmatprep.subr.mxu0 0.0
    %505 = vmatpush1.xpose.msra.mxu0 0.0
    %506 = vmatprep.subr.mxu0 0.0
    %507 = vmatpush1.xpose.msra.mxu0 0.0
    %508 = vmatprep.subr.mxu0 0.0
    %509 = vmatpush1.xpose.msra.mxu0 0.0
    %510 = vmatprep.subr.mxu0 0.0
    %511 = vmatpush1.xpose.msra.mxu0 0.0
    %512 = vmatprep.subr.mxu0 0.0
    %513 = vmatpush1.xpose.msra.mxu0 0.0
    %514 = vmatprep.subr.mxu0 0.0
    %515 = vmatpush1.xpose.msra.mxu0 0.0
    %516 = vmatprep.subr.mxu0 0.0
    %517 = vmatpush1.xpose.msra.mxu0 0.0
    %518 = vmatprep.subr.mxu0 0.0
    %519 = vmatpush1.xpose.msra.mxu0 0.0
    %520 = vmatprep.subr.mxu0 0.0
    %521 = vmatpush1.xpose.msra.mxu0 0.0
    %522 = vmatprep.subr.mxu0 0.0
    %523 = vmatpush1.xpose.msra.mxu0 0.0
    %524 = vmatprep.subr.mxu0 0.0
    %525 = vmatpush1.xpose.msra.mxu0 0.0
    %526 = vmatprep.subr.mxu0 0.0
    %527 = vmatpush1.xpose.msra.mxu0 0.0
    %528 = vmatprep.subr.mxu0 0.0
    %529 = vmatpush1.xpose.msra.mxu0 0.0
    %530 = vmatprep.subr.mxu0 0.0
    %531 = vmatpush1.xpose.msra.mxu0 %v498
    %532 = vmatprep.subr.mxu0 0.0
    %533 = vmatpush2.xpose.msra.mxu0 0.0
    %534 = vmatprep.subr.mxu0 0.0
    %535 = vmatpush2.xpose.msra.mxu0 0.0
    %536 = vmatprep.subr.mxu0 0.0
    %537 = vmatpush2.xpose.msra.mxu0 0.0
    %538 = vmatprep.subr.mxu0 0.0
    %539 = vmatpush2.xpose.msra.mxu0 0.0
    %540 = vmatprep.subr.mxu0 0.0
    %541 = vmatpush2.xpose.msra.mxu0 0.0
    %542 = vmatprep.subr.mxu0 0.0
    %543 = vmatpush2.xpose.msra.mxu0 0.0
    %544 = vmatprep.subr.mxu0 0.0
    %545 = vmatpush2.xpose.msra.mxu0 0.0
    %546 = vmatprep.subr.mxu0 0.0
    %547 = vmatpush2.xpose.msra.mxu0 0.0
    %548 = vmatprep.subr.mxu0 0.0
    %549 = vmatpush2.xpose.msra.mxu0 0.0
    %550 = vmatprep.subr.mxu0 0.0
    %551 = vmatpush2.xpose.msra.mxu0 0.0
    %552 = vmatprep.subr.mxu0 0.0
    %553 = vmatpush2.xpose.msra.mxu0 0.0
    %554 = vmatprep.subr.mxu0 0.0
    %555 = vmatpush2.xpose.msra.mxu0 0.0
    %556 = vmatprep.subr.mxu0 0.0
    %557 = vmatpush2.xpose.msra.mxu0 0.0
    %558 = vmatprep.subr.mxu0 0.0
    %559 = vmatpush2.xpose.msra.mxu0 0.0
    %560 = vmatprep.subr.mxu0 0.0
    %561 = vmatpush2.xpose.msra.mxu0 0.0
    %562 = vmatprep.subr.mxu0 0.0
    %563 = vmatpush2.xpose.msra.mxu0 0.0
    %564 = vmatprep.mubr.f32.mxu0 0.0
    %565 = vmatmul.mubr.f32.gmra.mxu0 %v495
    %v566 = vpop.f32.mrf.mxu0
    %v567 = vadd.f32 0.0, %v566
    %v568 = vpop.f32.mrf.mxu0
    %569 = vdwg.mxu0
    %v570 = vsel %vm416, %v491, -inf
    %v571 = vsel %vm416, %v567, -inf
    %vm572 = vcmask 64512
    %v573 = vsel %vm572, %v570, -inf
    %574 = vmax.xlane.f32.xlu0 %v573
    %v575 = vpop.xlane.xlu0 %574
    %v576 = vsel %vm572, %v571, -inf
    %577 = vmax.xlane.f32.xlu0 %v576
    %v578 = vpop.xlane.xlu0 %577
    %v579 = vsub.f32 %v570, %v575
    %v580 = vsub.f32 %v571, %v578
    %v581 = vmul.f32 %v579, 1.442695
    %v582 = vpow.pop %v581
    %v583 = vmul.f32 %v580, 1.442695
    %v584 = vpow.pop %v583
    %v585 = vsel %vm572, %v582, 0.0
    %586 = vadd.xlane.f32.xlu0 %v585
    %v587 = vpop.xlane.xlu0 %586
    %v588 = vsel %vm572, %v584, 0.0
    %589 = vadd.xlane.f32.xlu0 %v588
    %v590 = vpop.xlane.xlu0 %589
    %v591 = vrcp.pop %v587
    %v592 = vrcp.pop %v590
    %v593 = vmul.f32 %v582, %v591
    %v594 = vmul.f32 %v584, %v592
    %v596 = vsel %vm572, %v593, 0
    %598 = vmatprep.subr.mxu0 0.0
    %599 = vmatpush1.msra.mxu0 0.0
    %600 = vmatprep.subr.mxu0 0.0
    %601 = vmatpush1.msra.mxu0 0.0
    %602 = vmatprep.subr.mxu0 0.0
    %603 = vmatpush1.msra.mxu0 0.0
    %604 = vmatprep.subr.mxu0 0.0
    %605 = vmatpush1.msra.mxu0 0.0
    %606 = vmatprep.subr.mxu0 0.0
    %607 = vmatpush1.msra.mxu0 0.0
    %608 = vmatprep.subr.mxu0 0.0
    %609 = vmatpush1.msra.mxu0 0.0
    %610 = vmatprep.subr.mxu0 0.0
    %611 = vmatpush1.msra.mxu0 0.0
    %612 = vmatprep.subr.mxu0 0.0
    %613 = vmatpush1.msra.mxu0 0.0
    %614 = vmatprep.subr.mxu0 0.0
    %615 = vmatpush1.msra.mxu0 0.0
    %616 = vmatprep.subr.mxu0 0.0
    %617 = vmatpush1.msra.mxu0 0.0
    %618 = vmatprep.subr.mxu0 0.0
    %619 = vmatpush1.msra.mxu0 0.0
    %620 = vmatprep.subr.mxu0 0.0
    %621 = vmatpush1.msra.mxu0 0.0
    %622 = vmatprep.subr.mxu0 0.0
    %623 = vmatpush1.msra.mxu0 0.0
    %624 = vmatprep.subr.mxu0 0.0
    %625 = vmatpush1.msra.mxu0 0.0
    %626 = vmatprep.subr.mxu0 0.0
    %627 = vmatpush1.msra.mxu0 0.0
    %628 = vmatprep.subr.mxu0 0.0
    %629 = vmatpush1.msra.mxu0 %v402
    %630 = vmatprep.subr.mxu0 0.0
    %631 = vmatpush2.msra.mxu0 0.0
    %632 = vmatprep.subr.mxu0 0.0
    %633 = vmatpush2.msra.mxu0 0.0
    %634 = vmatprep.subr.mxu0 0.0
    %635 = vmatpush2.msra.mxu0 0.0
    %636 = vmatprep.subr.mxu0 0.0
    %637 = vmatpush2.msra.mxu0 0.0
    %638 = vmatprep.subr.mxu0 0.0
    %639 = vmatpush2.msra.mxu0 0.0
    %640 = vmatprep.subr.mxu0 0.0
    %641 = vmatpush2.msra.mxu0 0.0
    %642 = vmatprep.subr.mxu0 0.0
    %643 = vmatpush2.msra.mxu0 0.0
    %644 = vmatprep.subr.mxu0 0.0
    %645 = vmatpush2.msra.mxu0 0.0
    %646 = vmatprep.subr.mxu0 0.0
    %647 = vmatpush2.msra.mxu0 0.0
    %648 = vmatprep.subr.mxu0 0.0
    %649 = vmatpush2.msra.mxu0 0.0
    %650 = vmatprep.subr.mxu0 0.0
    %651 = vmatpush2.msra.mxu0 0.0
    %652 = vmatprep.subr.mxu0 0.0
    %653 = vmatpush2.msra.mxu0 0.0
    %654 = vmatprep.subr.mxu0 0.0
    %655 = vmatpush2.msra.mxu0 0.0
    %656 = vmatprep.subr.mxu0 0.0
    %657 = vmatpush2.msra.mxu0 0.0
    %658 = vmatprep.subr.mxu0 0.0
    %659 = vmatpush2.msra.mxu0 0.0
    %660 = vmatprep.subr.mxu0 0.0
    %661 = vmatpush2.msra.mxu0 0.0
    %662 = vmatprep.mubr.f32.mxu0 0.0
    %663 = vmatmul.mubr.f32.gmra.mxu0 %v596
    %v664 = vpop.f32.mrf.mxu0
    %v665 = vadd.f32 0.0, %v664
    %v666 = vpop.f32.mrf.mxu0
    %667 = vdwg.mxu0
    %v669 = vsel %vm572, %v594, 0
    %671 = vmatprep.subr.mxu0 0.0
    %672 = vmatpush1.msra.mxu0 0.0
    %673 = vmatprep.subr.mxu0 0.0
    %674 = vmatpush1.msra.mxu0 0.0
    %675 = vmatprep.subr.mxu0 0.0
    %676 = vmatpush1.msra.mxu0 0.0
    %677 = vmatprep.subr.mxu0 0.0
    %678 = vmatpush1.msra.mxu0 0.0
    %679 = vmatprep.subr.mxu0 0.0
    %680 = vmatpush1.msra.mxu0 0.0
    %681 = vmatprep.subr.mxu0 0.0
    %682 = vmatpush1.msra.mxu0 0.0
    %683 = vmatprep.subr.mxu0 0.0
    %684 = vmatpush1.msra.mxu0 0.0
    %685 = vmatprep.subr.mxu0 0.0
    %686 = vmatpush1.msra.mxu0 0.0
    %687 = vmatprep.subr.mxu0 0.0
    %688 = vmatpush1.msra.mxu0 0.0
    %689 = vmatprep.subr.mxu0 0.0
    %690 = vmatpush1.msra.mxu0 0.0
    %691 = vmatprep.subr.mxu0 0.0
    %692 = vmatpush1.msra.mxu0 0.0
    %693 = vmatprep.subr.mxu0 0.0
    %694 = vmatpush1.msra.mxu0 0.0
    %695 = vmatprep.subr.mxu0 0.0
    %696 = vmatpush1.msra.mxu0 0.0
    %697 = vmatprep.subr.mxu0 0.0
    %698 = vmatpush1.msra.mxu0 0.0
    %699 = vmatprep.subr.mxu0 0.0
    %700 = vmatpush1.msra.mxu0 0.0
    %701 = vmatprep.subr.mxu0 0.0
    %702 = vmatpush1.msra.mxu0 %v408
    %703 = vmatprep.subr.mxu0 0.0
    %704 = vmatpush2.msra.mxu0 0.0
    %705 = vmatprep.subr.mxu0 0.0
    %706 = vmatpush2.msra.mxu0 0.0
    %707 = vmatprep.subr.mxu0 0.0
    %708 = vmatpush2.msra.mxu0 0.0
    %709 = vmatprep.subr.mxu0 0.0
    %710 = vmatpush2.msra.mxu0 0.0
    %711 = vmatprep.subr.mxu0 0.0
    %712 = vmatpush2.msra.mxu0 0.0
    %713 = vmatprep.subr.mxu0 0.0
    %714 = vmatpush2.msra.mxu0 0.0
    %715 = vmatprep.subr.mxu0 0.0
    %716 = vmatpush2.msra.mxu0 0.0
    %717 = vmatprep.subr.mxu0 0.0
    %718 = vmatpush2.msra.mxu0 0.0
    %719 = vmatprep.subr.mxu0 0.0
    %720 = vmatpush2.msra.mxu0 0.0
    %721 = vmatprep.subr.mxu0 0.0
    %722 = vmatpush2.msra.mxu0 0.0
    %723 = vmatprep.subr.mxu0 0.0
    %724 = vmatpush2.msra.mxu0 0.0
    %725 = vmatprep.subr.mxu0 0.0
    %726 = vmatpush2.msra.mxu0 0.0
    %727 = vmatprep.subr.mxu0 0.0
    %728 = vmatpush2.msra.mxu0 0.0
    %729 = vmatprep.subr.mxu0 0.0
    %730 = vmatpush2.msra.mxu0 0.0
    %731 = vmatprep.subr.mxu0 0.0
    %732 = vmatpush2.msra.mxu0 0.0
    %733 = vmatprep.subr.mxu0 0.0
    %734 = vmatpush2.msra.mxu0 0.0
    %735 = vmatprep.mubr.f32.mxu0 0.0
    %736 = vmatmul.mubr.f32.gmra.mxu0 %v669
    %v737 = vpop.f32.mrf.mxu0
    %v738 = vadd.f32 0.0, %v737
    %v739 = vpop.f32.mrf.mxu0
    %740 = vdwg.mxu0
    %741 = vrot.lane.b32.xlu0 %v248, 64
    %v742 = vpop.permute.xlu0 %741
    %743 = vrot.lane.b32.xlu0 %v325, 64
    %v744 = vpop.permute.xlu0 %743
    %v745 = vsel %vm417, %v742, 0
    %v747 = vsel %vm417, %v744, 0
    %749 = vmatprep.subr.mxu0 0.0
    %750 = vmatpush1.xpose.msra.mxu0 0.0
    %751 = vmatprep.subr.mxu0 0.0
    %752 = vmatpush1.xpose.msra.mxu0 0.0
    %753 = vmatprep.subr.mxu0 0.0
    %754 = vmatpush1.xpose.msra.mxu0 0.0
    %755 = vmatprep.subr.mxu0 0.0
    %756 = vmatpush1.xpose.msra.mxu0 0.0
    %757 = vmatprep.subr.mxu0 0.0
    %758 = vmatpush1.xpose.msra.mxu0 0.0
    %759 = vmatprep.subr.mxu0 0.0
    %760 = vmatpush1.xpose.msra.mxu0 0.0
    %761 = vmatprep.subr.mxu0 0.0
    %762 = vmatpush1.xpose.msra.mxu0 0.0
    %763 = vmatprep.subr.mxu0 0.0
    %764 = vmatpush1.xpose.msra.mxu0 0.0
    %765 = vmatprep.subr.mxu0 0.0
    %766 = vmatpush1.xpose.msra.mxu0 0.0
    %767 = vmatprep.subr.mxu0 0.0
    %768 = vmatpush1.xpose.msra.mxu0 0.0
    %769 = vmatprep.subr.mxu0 0.0
    %770 = vmatpush1.xpose.msra.mxu0 0.0
    %771 = vmatprep.subr.mxu0 0.0
    %772 = vmatpush1.xpose.msra.mxu0 0.0
    %773 = vmatprep.subr.mxu0 0.0
    %774 = vmatpush1.xpose.msra.mxu0 0.0
    %775 = vmatprep.subr.mxu0 0.0
    %776 = vmatpush1.xpose.msra.mxu0 0.0
    %777 = vmatprep.subr.mxu0 0.0
    %778 = vmatpush1.xpose.msra.mxu0 0.0
    %779 = vmatprep.subr.mxu0 0.0
    %780 = vmatpush1.xpose.msra.mxu0 %v747
    %781 = vmatprep.subr.mxu0 0.0
    %782 = vmatpush2.xpose.msra.mxu0 0.0
    %783 = vmatprep.subr.mxu0 0.0
    %784 = vmatpush2.xpose.msra.mxu0 0.0
    %785 = vmatprep.subr.mxu0 0.0
    %786 = vmatpush2.xpose.msra.mxu0 0.0
    %787 = vmatprep.subr.mxu0 0.0
    %788 = vmatpush2.xpose.msra.mxu0 0.0
    %789 = vmatprep.subr.mxu0 0.0
    %790 = vmatpush2.xpose.msra.mxu0 0.0
    %791 = vmatprep.subr.mxu0 0.0
    %792 = vmatpush2.xpose.msra.mxu0 0.0
    %793 = vmatprep.subr.mxu0 0.0
    %794 = vmatpush2.xpose.msra.mxu0 0.0
    %795 = vmatprep.subr.mxu0 0.0
    %796 = vmatpush2.xpose.msra.mxu0 0.0
    %797 = vmatprep.subr.mxu0 0.0
    %798 = vmatpush2.xpose.msra.mxu0 0.0
    %799 = vmatprep.subr.mxu0 0.0
    %800 = vmatpush2.xpose.msra.mxu0 0.0
    %801 = vmatprep.subr.mxu0 0.0
    %802 = vmatpush2.xpose.msra.mxu0 0.0
    %803 = vmatprep.subr.mxu0 0.0
    %804 = vmatpush2.xpose.msra.mxu0 0.0
    %805 = vmatprep.subr.mxu0 0.0
    %806 = vmatpush2.xpose.msra.mxu0 0.0
    %807 = vmatprep.subr.mxu0 0.0
    %808 = vmatpush2.xpose.msra.mxu0 0.0
    %809 = vmatprep.subr.mxu0 0.0
    %810 = vmatpush2.xpose.msra.mxu0 0.0
    %811 = vmatprep.subr.mxu0 0.0
    %812 = vmatpush2.xpose.msra.mxu0 0.0
    %813 = vmatprep.mubr.f32.mxu0 0.0
    %814 = vmatmul.mubr.f32.gmra.mxu0 %v745
    %v815 = vpop.f32.mrf.mxu0
    %v816 = vadd.f32 0.0, %v815
    %v817 = vpop.f32.mrf.mxu0
    %818 = vdwg.mxu0
    %819 = vrot.lane.b32.xlu0 %v254, 64
    %v820 = vpop.permute.xlu0 %819
    %821 = vrot.lane.b32.xlu0 %v331, 64
    %v822 = vpop.permute.xlu0 %821
    %v823 = vsel %vm417, %v820, 0
    %v825 = vsel %vm417, %v822, 0
    %827 = vmatprep.subr.mxu0 0.0
    %828 = vmatpush1.xpose.msra.mxu0 0.0
    %829 = vmatprep.subr.mxu0 0.0
    %830 = vmatpush1.xpose.msra.mxu0 0.0
    %831 = vmatprep.subr.mxu0 0.0
    %832 = vmatpush1.xpose.msra.mxu0 0.0
    %833 = vmatprep.subr.mxu0 0.0
    %834 = vmatpush1.xpose.msra.mxu0 0.0
    %835 = vmatprep.subr.mxu0 0.0
    %836 = vmatpush1.xpose.msra.mxu0 0.0
    %837 = vmatprep.subr.mxu0 0.0
    %838 = vmatpush1.xpose.msra.mxu0 0.0
    %839 = vmatprep.subr.mxu0 0.0
    %840 = vmatpush1.xpose.msra.mxu0 0.0
    %841 = vmatprep.subr.mxu0 0.0
    %842 = vmatpush1.xpose.msra.mxu0 0.0
    %843 = vmatprep.subr.mxu0 0.0
    %844 = vmatpush1.xpose.msra.mxu0 0.0
    %845 = vmatprep.subr.mxu0 0.0
    %846 = vmatpush1.xpose.msra.mxu0 0.0
    %847 = vmatprep.subr.mxu0 0.0
    %848 = vmatpush1.xpose.msra.mxu0 0.0
    %849 = vmatprep.subr.mxu0 0.0
    %850 = vmatpush1.xpose.msra.mxu0 0.0
    %851 = vmatprep.subr.mxu0 0.0
    %852 = vmatpush1.xpose.msra.mxu0 0.0
    %853 = vmatprep.subr.mxu0 0.0
    %854 = vmatpush1.xpose.msra.mxu0 0.0
    %855 = vmatprep.subr.mxu0 0.0
    %856 = vmatpush1.xpose.msra.mxu0 0.0
    %857 = vmatprep.subr.mxu0 0.0
    %858 = vmatpush1.xpose.msra.mxu0 %v825
    %859 = vmatprep.subr.mxu0 0.0
    %860 = vmatpush2.xpose.msra.mxu0 0.0
    %861 = vmatprep.subr.mxu0 0.0
    %862 = vmatpush2.xpose.msra.mxu0 0.0
    %863 = vmatprep.subr.mxu0 0.0
    %864 = vmatpush2.xpose.msra.mxu0 0.0
    %865 = vmatprep.subr.mxu0 0.0
    %866 = vmatpush2.xpose.msra.mxu0 0.0
    %867 = vmatprep.subr.mxu0 0.0
    %868 = vmatpush2.xpose.msra.mxu0 0.0
    %869 = vmatprep.subr.mxu0 0.0
    %870 = vmatpush2.xpose.msra.mxu0 0.0
    %871 = vmatprep.subr.mxu0 0.0
    %872 = vmatpush2.xpose.msra.mxu0 0.0
    %873 = vmatprep.subr.mxu0 0.0
    %874 = vmatpush2.xpose.msra.mxu0 0.0
    %875 = vmatprep.subr.mxu0 0.0
    %876 = vmatpush2.xpose.msra.mxu0 0.0
    %877 = vmatprep.subr.mxu0 0.0
    %878 = vmatpush2.xpose.msra.mxu0 0.0
    %879 = vmatprep.subr.mxu0 0.0
    %880 = vmatpush2.xpose.msra.mxu0 0.0
    %881 = vmatprep.subr.mxu0 0.0
    %882 = vmatpush2.xpose.msra.mxu0 0.0
    %883 = vmatprep.subr.mxu0 0.0
    %884 = vmatpush2.xpose.msra.mxu0 0.0
    %885 = vmatprep.subr.mxu0 0.0
    %886 = vmatpush2.xpose.msra.mxu0 0.0
    %887 = vmatprep.subr.mxu0 0.0
    %888 = vmatpush2.xpose.msra.mxu0 0.0
    %889 = vmatprep.subr.mxu0 0.0
    %890 = vmatpush2.xpose.msra.mxu0 0.0
    %891 = vmatprep.mubr.f32.mxu0 0.0
    %892 = vmatmul.mubr.f32.gmra.mxu0 %v823
    %v893 = vpop.f32.mrf.mxu0
    %v894 = vadd.f32 0.0, %v893
    %v895 = vpop.f32.mrf.mxu0
    %896 = vdwg.mxu0
    %v897 = vsel %vm416, %v816, -inf
    %v898 = vsel %vm416, %v894, -inf
    %v899 = vsel %vm572, %v897, -inf
    %900 = vmax.xlane.f32.xlu0 %v899
    %v901 = vpop.xlane.xlu0 %900
    %v902 = vsel %vm572, %v898, -inf
    %903 = vmax.xlane.f32.xlu0 %v902
    %v904 = vpop.xlane.xlu0 %903
    %v905 = vsub.f32 %v897, %v901
    %v906 = vsub.f32 %v898, %v904
    %v907 = vmul.f32 %v905, 1.442695
    %v908 = vpow.pop %v907
    %v909 = vmul.f32 %v906, 1.442695
    %v910 = vpow.pop %v909
    %v911 = vsel %vm572, %v908, 0.0
    %912 = vadd.xlane.f32.xlu0 %v911
    %v913 = vpop.xlane.xlu0 %912
    %v914 = vsel %vm572, %v910, 0.0
    %915 = vadd.xlane.f32.xlu0 %v914
    %v916 = vpop.xlane.xlu0 %915
    %v917 = vrcp.pop %v913
    %v918 = vrcp.pop %v916
    %v919 = vmul.f32 %v908, %v917
    %v920 = vmul.f32 %v910, %v918
    %922 = vrot.lane.b32.xlu0 %v402, 64
    %v923 = vpop.permute.xlu0 %922
    %v926 = vsel %vm572, %v919, 0
    %928 = vmatprep.subr.mxu0 0.0
    %929 = vmatpush1.msra.mxu0 0.0
    %930 = vmatprep.subr.mxu0 0.0
    %931 = vmatpush1.msra.mxu0 0.0
    %932 = vmatprep.subr.mxu0 0.0
    %933 = vmatpush1.msra.mxu0 0.0
    %934 = vmatprep.subr.mxu0 0.0
    %935 = vmatpush1.msra.mxu0 0.0
    %936 = vmatprep.subr.mxu0 0.0
    %937 = vmatpush1.msra.mxu0 0.0
    %938 = vmatprep.subr.mxu0 0.0
    %939 = vmatpush1.msra.mxu0 0.0
    %940 = vmatprep.subr.mxu0 0.0
    %941 = vmatpush1.msra.mxu0 0.0
    %942 = vmatprep.subr.mxu0 0.0
    %943 = vmatpush1.msra.mxu0 0.0
    %944 = vmatprep.subr.mxu0 0.0
    %945 = vmatpush1.msra.mxu0 0.0
    %946 = vmatprep.subr.mxu0 0.0
    %947 = vmatpush1.msra.mxu0 0.0
    %948 = vmatprep.subr.mxu0 0.0
    %949 = vmatpush1.msra.mxu0 0.0
    %950 = vmatprep.subr.mxu0 0.0
    %951 = vmatpush1.msra.mxu0 0.0
    %952 = vmatprep.subr.mxu0 0.0
    %953 = vmatpush1.msra.mxu0 0.0
    %954 = vmatprep.subr.mxu0 0.0
    %955 = vmatpush1.msra.mxu0 0.0
    %956 = vmatprep.subr.mxu0 0.0
    %957 = vmatpush1.msra.mxu0 0.0
    %958 = vmatprep.subr.mxu0 0.0
    %959 = vmatpush1.msra.mxu0 %v923
    %960 = vmatprep.subr.mxu0 0.0
    %961 = vmatpush2.msra.mxu0 0.0
    %962 = vmatprep.subr.mxu0 0.0
    %963 = vmatpush2.msra.mxu0 0.0
    %964 = vmatprep.subr.mxu0 0.0
    %965 = vmatpush2.msra.mxu0 0.0
    %966 = vmatprep.subr.mxu0 0.0
    %967 = vmatpush2.msra.mxu0 0.0
    %968 = vmatprep.subr.mxu0 0.0
    %969 = vmatpush2.msra.mxu0 0.0
    %970 = vmatprep.subr.mxu0 0.0
    %971 = vmatpush2.msra.mxu0 0.0
    %972 = vmatprep.subr.mxu0 0.0
    %973 = vmatpush2.msra.mxu0 0.0
    %974 = vmatprep.subr.mxu0 0.0
    %975 = vmatpush2.msra.mxu0 0.0
    %976 = vmatprep.subr.mxu0 0.0
    %977 = vmatpush2.msra.mxu0 0.0
    %978 = vmatprep.subr.mxu0 0.0
    %979 = vmatpush2.msra.mxu0 0.0
    %980 = vmatprep.subr.mxu0 0.0
    %981 = vmatpush2.msra.mxu0 0.0
    %982 = vmatprep.subr.mxu0 0.0
    %983 = vmatpush2.msra.mxu0 0.0
    %984 = vmatprep.subr.mxu0 0.0
    %985 = vmatpush2.msra.mxu0 0.0
    %986 = vmatprep.subr.mxu0 0.0
    %987 = vmatpush2.msra.mxu0 0.0
    %988 = vmatprep.subr.mxu0 0.0
    %989 = vmatpush2.msra.mxu0 0.0
    %990 = vmatprep.subr.mxu0 0.0
    %991 = vmatpush2.msra.mxu0 0.0
    %992 = vmatprep.mubr.f32.mxu0 0.0
    %993 = vmatmul.mubr.f32.gmra.mxu0 %v926
    %v994 = vpop.f32.mrf.mxu0
    %v995 = vadd.f32 0.0, %v994
    %v996 = vpop.f32.mrf.mxu0
    %997 = vdwg.mxu0
    %999 = vrot.lane.b32.xlu0 %v408, 64
    %v1000 = vpop.permute.xlu0 %999
    %v1003 = vsel %vm572, %v920, 0
    %1005 = vmatprep.subr.mxu0 0.0
    %1006 = vmatpush1.msra.mxu0 0.0
    %1007 = vmatprep.subr.mxu0 0.0
    %1008 = vmatpush1.msra.mxu0 0.0
    %1009 = vmatprep.subr.mxu0 0.0
    %1010 = vmatpush1.msra.mxu0 0.0
    %1011 = vmatprep.subr.mxu0 0.0
    %1012 = vmatpush1.msra.mxu0 0.0
    %1013 = vmatprep.subr.mxu0 0.0
    %1014 = vmatpush1.msra.mxu0 0.0
    %1015 = vmatprep.subr.mxu0 0.0
    %1016 = vmatpush1.msra.mxu0 0.0
    %1017 = vmatprep.subr.mxu0 0.0
    %1018 = vmatpush1.msra.mxu0 0.0
    %1019 = vmatprep.subr.mxu0 0.0
    %1020 = vmatpush1.msra.mxu0 0.0
    %1021 = vmatprep.subr.mxu0 0.0
    %1022 = vmatpush1.msra.mxu0 0.0
    %1023 = vmatprep.subr.mxu0 0.0
    %1024 = vmatpush1.msra.mxu0 0.0
    %1025 = vmatprep.subr.mxu0 0.0
    %1026 = vmatpush1.msra.mxu0 0.0
    %1027 = vmatprep.subr.mxu0 0.0
    %1028 = vmatpush1.msra.mxu0 0.0
    %1029 = vmatprep.subr.mxu0 0.0
    %1030 = vmatpush1.msra.mxu0 0.0
    %1031 = vmatprep.subr.mxu0 0.0
    %1032 = vmatpush1.msra.mxu0 0.0
    %1033 = vmatprep.subr.mxu0 0.0
    %1034 = vmatpush1.msra.mxu0 0.0
    %1035 = vmatprep.subr.mxu0 0.0
    %1036 = vmatpush1.msra.mxu0 %v1000
    %1037 = vmatprep.subr.mxu0 0.0
    %1038 = vmatpush2.msra.mxu0 0.0
    %1039 = vmatprep.subr.mxu0 0.0
    %1040 = vmatpush2.msra.mxu0 0.0
    %1041 = vmatprep.subr.mxu0 0.0
    %1042 = vmatpush2.msra.mxu0 0.0
    %1043 = vmatprep.subr.mxu0 0.0
    %1044 = vmatpush2.msra.mxu0 0.0
    %1045 = vmatprep.subr.mxu0 0.0
    %1046 = vmatpush2.msra.mxu0 0.0
    %1047 = vmatprep.subr.mxu0 0.0
    %1048 = vmatpush2.msra.mxu0 0.0
    %1049 = vmatprep.subr.mxu0 0.0
    %1050 = vmatpush2.msra.mxu0 0.0
    %1051 = vmatprep.subr.mxu0 0.0
    %1052 = vmatpush2.msra.mxu0 0.0
    %1053 = vmatprep.subr.mxu0 0.0
    %1054 = vmatpush2.msra.mxu0 0.0
    %1055 = vmatprep.subr.mxu0 0.0
    %1056 = vmatpush2.msra.mxu0 0.0
    %1057 = vmatprep.subr.mxu0 0.0
    %1058 = vmatpush2.msra.mxu0 0.0
    %1059 = vmatprep.subr.mxu0 0.0
    %1060 = vmatpush2.msra.mxu0 0.0
    %1061 = vmatprep.subr.mxu0 0.0
    %1062 = vmatpush2.msra.mxu0 0.0
    %1063 = vmatprep.subr.mxu0 0.0
    %1064 = vmatpush2.msra.mxu0 0.0
    %1065 = vmatprep.subr.mxu0 0.0
    %1066 = vmatpush2.msra.mxu0 0.0
    %1067 = vmatprep.subr.mxu0 0.0
    %1068 = vmatpush2.msra.mxu0 0.0
    %1069 = vmatprep.mubr.f32.mxu0 0.0
    %1070 = vmatmul.mubr.f32.gmra.mxu0 %v1003
    %v1071 = vpop.f32.mrf.mxu0
    %v1072 = vadd.f32 0.0, %v1071
    %v1073 = vpop.f32.mrf.mxu0
    %1074 = vdwg.mxu0
    %v1076 = vsel %vm417, %v250, 0
    %v1079 = vsel %vm417, %v327, 0
    %1081 = vmatprep.subr.mxu0 0.0
    %1082 = vmatpush1.xpose.msra.mxu0 0.0
    %1083 = vmatprep.subr.mxu0 0.0
    %1084 = vmatpush1.xpose.msra.mxu0 0.0
    %1085 = vmatprep.subr.mxu0 0.0
    %1086 = vmatpush1.xpose.msra.mxu0 0.0
    %1087 = vmatprep.subr.mxu0 0.0
    %1088 = vmatpush1.xpose.msra.mxu0 0.0
    %1089 = vmatprep.subr.mxu0 0.0
    %1090 = vmatpush1.xpose.msra.mxu0 0.0
    %1091 = vmatprep.subr.mxu0 0.0
    %1092 = vmatpush1.xpose.msra.mxu0 0.0
    %1093 = vmatprep.subr.mxu0 0.0
    %1094 = vmatpush1.xpose.msra.mxu0 0.0
    %1095 = vmatprep.subr.mxu0 0.0
    %1096 = vmatpush1.xpose.msra.mxu0 0.0
    %1097 = vmatprep.subr.mxu0 0.0
    %1098 = vmatpush1.xpose.msra.mxu0 0.0
    %1099 = vmatprep.subr.mxu0 0.0
    %1100 = vmatpush1.xpose.msra.mxu0 0.0
    %1101 = vmatprep.subr.mxu0 0.0
    %1102 = vmatpush1.xpose.msra.mxu0 0.0
    %1103 = vmatprep.subr.mxu0 0.0
    %1104 = vmatpush1.xpose.msra.mxu0 0.0
    %1105 = vmatprep.subr.mxu0 0.0
    %1106 = vmatpush1.xpose.msra.mxu0 0.0
    %1107 = vmatprep.subr.mxu0 0.0
    %1108 = vmatpush1.xpose.msra.mxu0 0.0
    %1109 = vmatprep.subr.mxu0 0.0
    %1110 = vmatpush1.xpose.msra.mxu0 0.0
    %1111 = vmatprep.subr.mxu0 0.0
    %1112 = vmatpush1.xpose.msra.mxu0 %v1079
    %1113 = vmatprep.subr.mxu0 0.0
    %1114 = vmatpush2.xpose.msra.mxu0 0.0
    %1115 = vmatprep.subr.mxu0 0.0
    %1116 = vmatpush2.xpose.msra.mxu0 0.0
    %1117 = vmatprep.subr.mxu0 0.0
    %1118 = vmatpush2.xpose.msra.mxu0 0.0
    %1119 = vmatprep.subr.mxu0 0.0
    %1120 = vmatpush2.xpose.msra.mxu0 0.0
    %1121 = vmatprep.subr.mxu0 0.0
    %1122 = vmatpush2.xpose.msra.mxu0 0.0
    %1123 = vmatprep.subr.mxu0 0.0
    %1124 = vmatpush2.xpose.msra.mxu0 0.0
    %1125 = vmatprep.subr.mxu0 0.0
    %1126 = vmatpush2.xpose.msra.mxu0 0.0
    %1127 = vmatprep.subr.mxu0 0.0
    %1128 = vmatpush2.xpose.msra.mxu0 0.0
    %1129 = vmatprep.subr.mxu0 0.0
    %1130 = vmatpush2.xpose.msra.mxu0 0.0
    %1131 = vmatprep.subr.mxu0 0.0
    %1132 = vmatpush2.xpose.msra.mxu0 0.0
    %1133 = vmatprep.subr.mxu0 0.0
    %1134 = vmatpush2.xpose.msra.mxu0 0.0
    %1135 = vmatprep.subr.mxu0 0.0
    %1136 = vmatpush2.xpose.msra.mxu0 0.0
    %1137 = vmatprep.subr.mxu0 0.0
    %1138 = vmatpush2.xpose.msra.mxu0 0.0
    %1139 = vmatprep.subr.mxu0 0.0
    %1140 = vmatpush2.xpose.msra.mxu0 0.0
    %1141 = vmatprep.subr.mxu0 0.0
    %1142 = vmatpush2.xpose.msra.mxu0 0.0
    %1143 = vmatprep.subr.mxu0 0.0
    %1144 = vmatpush2.xpose.msra.mxu0 0.0
    %1145 = vmatprep.mubr.f32.mxu0 0.0
    %1146 = vmatmul.mubr.f32.gmra.mxu0 %v1076
    %v1147 = vpop.f32.mrf.mxu0
    %v1148 = vadd.f32 0.0, %v1147
    %v1149 = vpop.f32.mrf.mxu0
    %1150 = vdwg.mxu0
    %v1152 = vsel %vm417, %v256, 0
    %v1155 = vsel %vm417, %v333, 0
    %1157 = vmatprep.subr.mxu0 0.0
    %1158 = vmatpush1.xpose.msra.mxu0 0.0
    %1159 = vmatprep.subr.mxu0 0.0
    %1160 = vmatpush1.xpose.msra.mxu0 0.0
    %1161 = vmatprep.subr.mxu0 0.0
    %1162 = vmatpush1.xpose.msra.mxu0 0.0
    %1163 = vmatprep.subr.mxu0 0.0
    %1164 = vmatpush1.xpose.msra.mxu0 0.0
    %1165 = vmatprep.subr.mxu0 0.0
    %1166 = vmatpush1.xpose.msra.mxu0 0.0
    %1167 = vmatprep.subr.mxu0 0.0
    %1168 = vmatpush1.xpose.msra.mxu0 0.0
    %1169 = vmatprep.subr.mxu0 0.0
    %1170 = vmatpush1.xpose.msra.mxu0 0.0
    %1171 = vmatprep.subr.mxu0 0.0
    %1172 = vmatpush1.xpose.msra.mxu0 0.0
    %1173 = vmatprep.subr.mxu0 0.0
    %1174 = vmatpush1.xpose.msra.mxu0 0.0
    %1175 = vmatprep.subr.mxu0 0.0
    %1176 = vmatpush1.xpose.msra.mxu0 0.0
    %1177 = vmatprep.subr.mxu0 0.0
    %1178 = vmatpush1.xpose.msra.mxu0 0.0
    %1179 = vmatprep.subr.mxu0 0.0
    %1180 = vmatpush1.xpose.msra.mxu0 0.0
    %1181 = vmatprep.subr.mxu0 0.0
    %1182 = vmatpush1.xpose.msra.mxu0 0.0
    %1183 = vmatprep.subr.mxu0 0.0
    %1184 = vmatpush1.xpose.msra.mxu0 0.0
    %1185 = vmatprep.subr.mxu0 0.0
    %1186 = vmatpush1.xpose.msra.mxu0 0.0
    %1187 = vmatprep.subr.mxu0 0.0
    %1188 = vmatpush1.xpose.msra.mxu0 %v1155
    %1189 = vmatprep.subr.mxu0 0.0
    %1190 = vmatpush2.xpose.msra.mxu0 0.0
    %1191 = vmatprep.subr.mxu0 0.0
    %1192 = vmatpush2.xpose.msra.mxu0 0.0
    %1193 = vmatprep.subr.mxu0 0.0
    %1194 = vmatpush2.xpose.msra.mxu0 0.0
    %1195 = vmatprep.subr.mxu0 0.0
    %1196 = vmatpush2.xpose.msra.mxu0 0.0
    %1197 = vmatprep.subr.mxu0 0.0
    %1198 = vmatpush2.xpose.msra.mxu0 0.0
    %1199 = vmatprep.subr.mxu0 0.0
    %1200 = vmatpush2.xpose.msra.mxu0 0.0
    %1201 = vmatprep.subr.mxu0 0.0
    %1202 = vmatpush2.xpose.msra.mxu0 0.0
    %1203 = vmatprep.subr.mxu0 0.0
    %1204 = vmatpush2.xpose.msra.mxu0 0.0
    %1205 = vmatprep.subr.mxu0 0.0
    %1206 = vmatpush2.xpose.msra.mxu0 0.0
    %1207 = vmatprep.subr.mxu0 0.0
    %1208 = vmatpush2.xpose.msra.mxu0 0.0
    %1209 = vmatprep.subr.mxu0 0.0
    %1210 = vmatpush2.xpose.msra.mxu0 0.0
    %1211 = vmatprep.subr.mxu0 0.0
    %1212 = vmatpush2.xpose.msra.mxu0 0.0
    %1213 = vmatprep.subr.mxu0 0.0
    %1214 = vmatpush2.xpose.msra.mxu0 0.0
    %1215 = vmatprep.subr.mxu0 0.0
    %1216 = vmatpush2.xpose.msra.mxu0 0.0
    %1217 = vmatprep.subr.mxu0 0.0
    %1218 = vmatpush2.xpose.msra.mxu0 0.0
    %1219 = vmatprep.subr.mxu0 0.0
    %1220 = vmatpush2.xpose.msra.mxu0 0.0
    %1221 = vmatprep.mubr.f32.mxu0 0.0
    %1222 = vmatmul.mubr.f32.gmra.mxu0 %v1152
    %v1223 = vpop.f32.mrf.mxu0
    %v1224 = vadd.f32 0.0, %v1223
    %v1225 = vpop.f32.mrf.mxu0
    %1226 = vdwg.mxu0
    %v1227 = vsel %vm416, %v1148, -inf
    %v1228 = vsel %vm416, %v1224, -inf
    %v1229 = vsel %vm572, %v1227, -inf
    %1230 = vmax.xlane.f32.xlu0 %v1229
    %v1231 = vpop.xlane.xlu0 %1230
    %v1232 = vsel %vm572, %v1228, -inf
    %1233 = vmax.xlane.f32.xlu0 %v1232
    %v1234 = vpop.xlane.xlu0 %1233
    %v1235 = vsub.f32 %v1227, %v1231
    %v1236 = vsub.f32 %v1228, %v1234
    %v1237 = vmul.f32 %v1235, 1.442695
    %v1238 = vpow.pop %v1237
    %v1239 = vmul.f32 %v1236, 1.442695
    %v1240 = vpow.pop %v1239
    %v1241 = vsel %vm572, %v1238, 0.0
    %1242 = vadd.xlane.f32.xlu0 %v1241
    %v1243 = vpop.xlane.xlu0 %1242
    %v1244 = vsel %vm572, %v1240, 0.0
    %1245 = vadd.xlane.f32.xlu0 %v1244
    %v1246 = vpop.xlane.xlu0 %1245
    %v1247 = vrcp.pop %v1243
    %v1248 = vrcp.pop %v1246
    %v1249 = vmul.f32 %v1238, %v1247
    %v1250 = vmul.f32 %v1240, %v1248
    %v1252 = vsel %vm572, %v1249, 0
    %1254 = vmatprep.subr.mxu0 0.0
    %1255 = vmatpush1.msra.mxu0 0.0
    %1256 = vmatprep.subr.mxu0 0.0
    %1257 = vmatpush1.msra.mxu0 0.0
    %1258 = vmatprep.subr.mxu0 0.0
    %1259 = vmatpush1.msra.mxu0 0.0
    %1260 = vmatprep.subr.mxu0 0.0
    %1261 = vmatpush1.msra.mxu0 0.0
    %1262 = vmatprep.subr.mxu0 0.0
    %1263 = vmatpush1.msra.mxu0 0.0
    %1264 = vmatprep.subr.mxu0 0.0
    %1265 = vmatpush1.msra.mxu0 0.0
    %1266 = vmatprep.subr.mxu0 0.0
    %1267 = vmatpush1.msra.mxu0 0.0
    %1268 = vmatprep.subr.mxu0 0.0
    %1269 = vmatpush1.msra.mxu0 0.0
    %1270 = vmatprep.subr.mxu0 0.0
    %1271 = vmatpush1.msra.mxu0 0.0
    %1272 = vmatprep.subr.mxu0 0.0
    %1273 = vmatpush1.msra.mxu0 0.0
    %1274 = vmatprep.subr.mxu0 0.0
    %1275 = vmatpush1.msra.mxu0 0.0
    %1276 = vmatprep.subr.mxu0 0.0
    %1277 = vmatpush1.msra.mxu0 0.0
    %1278 = vmatprep.subr.mxu0 0.0
    %1279 = vmatpush1.msra.mxu0 0.0
    %1280 = vmatprep.subr.mxu0 0.0
    %1281 = vmatpush1.msra.mxu0 0.0
    %1282 = vmatprep.subr.mxu0 0.0
    %1283 = vmatpush1.msra.mxu0 0.0
    %1284 = vmatprep.subr.mxu0 0.0
    %1285 = vmatpush1.msra.mxu0 %v404
    %1286 = vmatprep.subr.mxu0 0.0
    %1287 = vmatpush2.msra.mxu0 0.0
    %1288 = vmatprep.subr.mxu0 0.0
    %1289 = vmatpush2.msra.mxu0 0.0
    %1290 = vmatprep.subr.mxu0 0.0
    %1291 = vmatpush2.msra.mxu0 0.0
    %1292 = vmatprep.subr.mxu0 0.0
    %1293 = vmatpush2.msra.mxu0 0.0
    %1294 = vmatprep.subr.mxu0 0.0
    %1295 = vmatpush2.msra.mxu0 0.0
    %1296 = vmatprep.subr.mxu0 0.0
    %1297 = vmatpush2.msra.mxu0 0.0
    %1298 = vmatprep.subr.mxu0 0.0
    %1299 = vmatpush2.msra.mxu0 0.0
    %1300 = vmatprep.subr.mxu0 0.0
    %1301 = vmatpush2.msra.mxu0 0.0
    %1302 = vmatprep.subr.mxu0 0.0
    %1303 = vmatpush2.msra.mxu0 0.0
    %1304 = vmatprep.subr.mxu0 0.0
    %1305 = vmatpush2.msra.mxu0 0.0
    %1306 = vmatprep.subr.mxu0 0.0
    %1307 = vmatpush2.msra.mxu0 0.0
    %1308 = vmatprep.subr.mxu0 0.0
    %1309 = vmatpush2.msra.mxu0 0.0
    %1310 = vmatprep.subr.mxu0 0.0
    %1311 = vmatpush2.msra.mxu0 0.0
    %1312 = vmatprep.subr.mxu0 0.0
    %1313 = vmatpush2.msra.mxu0 0.0
    %1314 = vmatprep.subr.mxu0 0.0
    %1315 = vmatpush2.msra.mxu0 0.0
    %1316 = vmatprep.subr.mxu0 0.0
    %1317 = vmatpush2.msra.mxu0 0.0
    %1318 = vmatprep.mubr.f32.mxu0 0.0
    %1319 = vmatmul.mubr.f32.gmra.mxu0 %v1252
    %v1320 = vpop.f32.mrf.mxu0
    %v1321 = vadd.f32 0.0, %v1320
    %v1322 = vpop.f32.mrf.mxu0
    %1323 = vdwg.mxu0
    %v1325 = vsel %vm572, %v1250, 0
    %1327 = vmatprep.subr.mxu0 0.0
    %1328 = vmatpush1.msra.mxu0 0.0
    %1329 = vmatprep.subr.mxu0 0.0
    %1330 = vmatpush1.msra.mxu0 0.0
    %1331 = vmatprep.subr.mxu0 0.0
    %1332 = vmatpush1.msra.mxu0 0.0
    %1333 = vmatprep.subr.mxu0 0.0
    %1334 = vmatpush1.msra.mxu0 0.0
    %1335 = vmatprep.subr.mxu0 0.0
    %1336 = vmatpush1.msra.mxu0 0.0
    %1337 = vmatprep.subr.mxu0 0.0
    %1338 = vmatpush1.msra.mxu0 0.0
    %1339 = vmatprep.subr.mxu0 0.0
    %1340 = vmatpush1.msra.mxu0 0.0
    %1341 = vmatprep.subr.mxu0 0.0
    %1342 = vmatpush1.msra.mxu0 0.0
    %1343 = vmatprep.subr.mxu0 0.0
    %1344 = vmatpush1.msra.mxu0 0.0
    %1345 = vmatprep.subr.mxu0 0.0
    %1346 = vmatpush1.msra.mxu0 0.0
    %1347 = vmatprep.subr.mxu0 0.0
    %1348 = vmatpush1.msra.mxu0 0.0
    %1349 = vmatprep.subr.mxu0 0.0
    %1350 = vmatpush1.msra.mxu0 0.0
    %1351 = vmatprep.subr.mxu0 0.0
    %1352 = vmatpush1.msra.mxu0 0.0
    %1353 = vmatprep.subr.mxu0 0.0
    %1354 = vmatpush1.msra.mxu0 0.0
    %1355 = vmatprep.subr.mxu0 0.0
    %1356 = vmatpush1.msra.mxu0 0.0
    %1357 = vmatprep.subr.mxu0 0.0
    %1358 = vmatpush1.msra.mxu0 %v410
    %1359 = vmatprep.subr.mxu0 0.0
    %1360 = vmatpush2.msra.mxu0 0.0
    %1361 = vmatprep.subr.mxu0 0.0
    %1362 = vmatpush2.msra.mxu0 0.0
    %1363 = vmatprep.subr.mxu0 0.0
    %1364 = vmatpush2.msra.mxu0 0.0
    %1365 = vmatprep.subr.mxu0 0.0
    %1366 = vmatpush2.msra.mxu0 0.0
    %1367 = vmatprep.subr.mxu0 0.0
    %1368 = vmatpush2.msra.mxu0 0.0
    %1369 = vmatprep.subr.mxu0 0.0
    %1370 = vmatpush2.msra.mxu0 0.0
    %1371 = vmatprep.subr.mxu0 0.0
    %1372 = vmatpush2.msra.mxu0 0.0
    %1373 = vmatprep.subr.mxu0 0.0
    %1374 = vmatpush2.msra.mxu0 0.0
    %1375 = vmatprep.subr.mxu0 0.0
    %1376 = vmatpush2.msra.mxu0 0.0
    %1377 = vmatprep.subr.mxu0 0.0
    %1378 = vmatpush2.msra.mxu0 0.0
    %1379 = vmatprep.subr.mxu0 0.0
    %1380 = vmatpush2.msra.mxu0 0.0
    %1381 = vmatprep.subr.mxu0 0.0
    %1382 = vmatpush2.msra.mxu0 0.0
    %1383 = vmatprep.subr.mxu0 0.0
    %1384 = vmatpush2.msra.mxu0 0.0
    %1385 = vmatprep.subr.mxu0 0.0
    %1386 = vmatpush2.msra.mxu0 0.0
    %1387 = vmatprep.subr.mxu0 0.0
    %1388 = vmatpush2.msra.mxu0 0.0
    %1389 = vmatprep.subr.mxu0 0.0
    %1390 = vmatpush2.msra.mxu0 0.0
    %1391 = vmatprep.mubr.f32.mxu0 0.0
    %1392 = vmatmul.mubr.f32.gmra.mxu0 %v1325
    %v1393 = vpop.f32.mrf.mxu0
    %v1394 = vadd.f32 0.0, %v1393
    %v1395 = vpop.f32.mrf.mxu0
    %1396 = vdwg.mxu0
    %1397 = vrot.lane.b32.xlu0 %v250, 64
    %v1398 = vpop.permute.xlu0 %1397
    %1399 = vrot.lane.b32.xlu0 %v327, 64
    %v1400 = vpop.permute.xlu0 %1399
    %v1401 = vsel %vm417, %v1398, 0
    %v1403 = vsel %vm417, %v1400, 0
    %1405 = vmatprep.subr.mxu0 0.0
    %1406 = vmatpush1.xpose.msra.mxu0 0.0
    %1407 = vmatprep.subr.mxu0 0.0
    %1408 = vmatpush1.xpose.msra.mxu0 0.0
    %1409 = vmatprep.subr.mxu0 0.0
    %1410 = vmatpush1.xpose.msra.mxu0 0.0
    %1411 = vmatprep.subr.mxu0 0.0
    %1412 = vmatpush1.xpose.msra.mxu0 0.0
    %1413 = vmatprep.subr.mxu0 0.0
    %1414 = vmatpush1.xpose.msra.mxu0 0.0
    %1415 = vmatprep.subr.mxu0 0.0
    %1416 = vmatpush1.xpose.msra.mxu0 0.0
    %1417 = vmatprep.subr.mxu0 0.0
    %1418 = vmatpush1.xpose.msra.mxu0 0.0
    %1419 = vmatprep.subr.mxu0 0.0
    %1420 = vmatpush1.xpose.msra.mxu0 0.0
    %1421 = vmatprep.subr.mxu0 0.0
    %1422 = vmatpush1.xpose.msra.mxu0 0.0
    %1423 = vmatprep.subr.mxu0 0.0
    %1424 = vmatpush1.xpose.msra.mxu0 0.0
    %1425 = vmatprep.subr.mxu0 0.0
    %1426 = vmatpush1.xpose.msra.mxu0 0.0
    %1427 = vmatprep.subr.mxu0 0.0
    %1428 = vmatpush1.xpose.msra.mxu0 0.0
    %1429 = vmatprep.subr.mxu0 0.0
    %1430 = vmatpush1.xpose.msra.mxu0 0.0
    %1431 = vmatprep.subr.mxu0 0.0
    %1432 = vmatpush1.xpose.msra.mxu0 0.0
    %1433 = vmatprep.subr.mxu0 0.0
    %1434 = vmatpush1.xpose.msra.mxu0 0.0
    %1435 = vmatprep.subr.mxu0 0.0
    %1436 = vmatpush1.xpose.msra.mxu0 %v1403
    %1437 = vmatprep.subr.mxu0 0.0
    %1438 = vmatpush2.xpose.msra.mxu0 0.0
    %1439 = vmatprep.subr.mxu0 0.0
    %1440 = vmatpush2.xpose.msra.mxu0 0.0
    %1441 = vmatprep.subr.mxu0 0.0
    %1442 = vmatpush2.xpose.msra.mxu0 0.0
    %1443 = vmatprep.subr.mxu0 0.0
    %1444 = vmatpush2.xpose.msra.mxu0 0.0
    %1445 = vmatprep.subr.mxu0 0.0
    %1446 = vmatpush2.xpose.msra.mxu0 0.0
    %1447 = vmatprep.subr.mxu0 0.0
    %1448 = vmatpush2.xpose.msra.mxu0 0.0
    %1449 = vmatprep.subr.mxu0 0.0
    %1450 = vmatpush2.xpose.msra.mxu0 0.0
    %1451 = vmatprep.subr.mxu0 0.0
    %1452 = vmatpush2.xpose.msra.mxu0 0.0
    %1453 = vmatprep.subr.mxu0 0.0
    %1454 = vmatpush2.xpose.msra.mxu0 0.0
    %1455 = vmatprep.subr.mxu0 0.0
    %1456 = vmatpush2.xpose.msra.mxu0 0.0
    %1457 = vmatprep.subr.mxu0 0.0
    %1458 = vmatpush2.xpose.msra.mxu0 0.0
    %1459 = vmatprep.subr.mxu0 0.0
    %1460 = vmatpush2.xpose.msra.mxu0 0.0
    %1461 = vmatprep.subr.mxu0 0.0
    %1462 = vmatpush2.xpose.msra.mxu0 0.0
    %1463 = vmatprep.subr.mxu0 0.0
    %1464 = vmatpush2.xpose.msra.mxu0 0.0
    %1465 = vmatprep.subr.mxu0 0.0
    %1466 = vmatpush2.xpose.msra.mxu0 0.0
    %1467 = vmatprep.subr.mxu0 0.0
    %1468 = vmatpush2.xpose.msra.mxu0 0.0
    %1469 = vmatprep.mubr.f32.mxu0 0.0
    %1470 = vmatmul.mubr.f32.gmra.mxu0 %v1401
    %v1471 = vpop.f32.mrf.mxu0
    %v1472 = vadd.f32 0.0, %v1471
    %v1473 = vpop.f32.mrf.mxu0
    %1474 = vdwg.mxu0
    %1475 = vrot.lane.b32.xlu0 %v256, 64
    %v1476 = vpop.permute.xlu0 %1475
    %1477 = vrot.lane.b32.xlu0 %v333, 64
    %v1478 = vpop.permute.xlu0 %1477
    %v1479 = vsel %vm417, %v1476, 0
    %v1481 = vsel %vm417, %v1478, 0
    %1483 = vmatprep.subr.mxu0 0.0
    %1484 = vmatpush1.xpose.msra.mxu0 0.0
    %1485 = vmatprep.subr.mxu0 0.0
    %1486 = vmatpush1.xpose.msra.mxu0 0.0
    %1487 = vmatprep.subr.mxu0 0.0
    %1488 = vmatpush1.xpose.msra.mxu0 0.0
    %1489 = vmatprep.subr.mxu0 0.0
    %1490 = vmatpush1.xpose.msra.mxu0 0.0
    %1491 = vmatprep.subr.mxu0 0.0
    %1492 = vmatpush1.xpose.msra.mxu0 0.0
    %1493 = vmatprep.subr.mxu0 0.0
    %1494 = vmatpush1.xpose.msra.mxu0 0.0
    %1495 = vmatprep.subr.mxu0 0.0
    %1496 = vmatpush1.xpose.msra.mxu0 0.0
    %1497 = vmatprep.subr.mxu0 0.0
    %1498 = vmatpush1.xpose.msra.mxu0 0.0
    %1499 = vmatprep.subr.mxu0 0.0
    %1500 = vmatpush1.xpose.msra.mxu0 0.0
    %1501 = vmatprep.subr.mxu0 0.0
    %1502 = vmatpush1.xpose.msra.mxu0 0.0
    %1503 = vmatprep.subr.mxu0 0.0
    %1504 = vmatpush1.xpose.msra.mxu0 0.0
    %1505 = vmatprep.subr.mxu0 0.0
    %1506 = vmatpush1.xpose.msra.mxu0 0.0
    %1507 = vmatprep.subr.mxu0 0.0
    %1508 = vmatpush1.xpose.msra.mxu0 0.0
    %1509 = vmatprep.subr.mxu0 0.0
    %1510 = vmatpush1.xpose.msra.mxu0 0.0
    %1511 = vmatprep.subr.mxu0 0.0
    %1512 = vmatpush1.xpose.msra.mxu0 0.0
    %1513 = vmatprep.subr.mxu0 0.0
    %1514 = vmatpush1.xpose.msra.mxu0 %v1481
    %1515 = vmatprep.subr.mxu0 0.0
    %1516 = vmatpush2.xpose.msra.mxu0 0.0
    %1517 = vmatprep.subr.mxu0 0.0
    %1518 = vmatpush2.xpose.msra.mxu0 0.0
    %1519 = vmatprep.subr.mxu0 0.0
    %1520 = vmatpush2.xpose.msra.mxu0 0.0
    %1521 = vmatprep.subr.mxu0 0.0
    %1522 = vmatpush2.xpose.msra.mxu0 0.0
    %1523 = vmatprep.subr.mxu0 0.0
    %1524 = vmatpush2.xpose.msra.mxu0 0.0
    %1525 = vmatprep.subr.mxu0 0.0
    %1526 = vmatpush2.xpose.msra.mxu0 0.0
    %1527 = vmatprep.subr.mxu0 0.0
    %1528 = vmatpush2.xpose.msra.mxu0 0.0
    %1529 = vmatprep.subr.mxu0 0.0
    %1530 = vmatpush2.xpose.msra.mxu0 0.0
    %1531 = vmatprep.subr.mxu0 0.0
    %1532 = vmatpush2.xpose.msra.mxu0 0.0
    %1533 = vmatprep.subr.mxu0 0.0
    %1534 = vmatpush2.xpose.msra.mxu0 0.0
    %1535 = vmatprep.subr.mxu0 0.0
    %1536 = vmatpush2.xpose.msra.mxu0 0.0
    %1537 = vmatprep.subr.mxu0 0.0
    %1538 = vmatpush2.xpose.msra.mxu0 0.0
    %1539 = vmatprep.subr.mxu0 0.0
    %1540 = vmatpush2.xpose.msra.mxu0 0.0
    %1541 = vmatprep.subr.mxu0 0.0
    %1542 = vmatpush2.xpose.msra.mxu0 0.0
    %1543 = vmatprep.subr.mxu0 0.0
    %1544 = vmatpush2.xpose.msra.mxu0 0.0
    %1545 = vmatprep.subr.mxu0 0.0
    %1546 = vmatpush2.xpose.msra.mxu0 0.0
    %1547 = vmatprep.mubr.f32.mxu0 0.0
    %1548 = vmatmul.mubr.f32.gmra.mxu0 %v1479
    %v1549 = vpop.f32.mrf.mxu0
    %v1550 = vadd.f32 0.0, %v1549
    %v1551 = vpop.f32.mrf.mxu0
    %1552 = vdwg.mxu0
    %v1553 = vsel %vm416, %v1472, -inf
    %v1554 = vsel %vm416, %v1550, -inf
    %v1555 = vsel %vm572, %v1553, -inf
    %1556 = vmax.xlane.f32.xlu0 %v1555
    %v1557 = vpop.xlane.xlu0 %1556
    %v1558 = vsel %vm572, %v1554, -inf
    %1559 = vmax.xlane.f32.xlu0 %v1558
    %v1560 = vpop.xlane.xlu0 %1559
    %v1561 = vsub.f32 %v1553, %v1557
    %v1562 = vsub.f32 %v1554, %v1560
    %v1563 = vmul.f32 %v1561, 1.442695
    %v1564 = vpow.pop %v1563
    %v1565 = vmul.f32 %v1562, 1.442695
    %v1566 = vpow.pop %v1565
    %v1567 = vsel %vm572, %v1564, 0.0
    %1568 = vadd.xlane.f32.xlu0 %v1567
    %v1569 = vpop.xlane.xlu0 %1568
    %v1570 = vsel %vm572, %v1566, 0.0
    %1571 = vadd.xlane.f32.xlu0 %v1570
    %v1572 = vpop.xlane.xlu0 %1571
    %v1573 = vrcp.pop %v1569
    %v1574 = vrcp.pop %v1572
    %v1575 = vmul.f32 %v1564, %v1573
    %v1576 = vmul.f32 %v1566, %v1574
    %1578 = vrot.lane.b32.xlu0 %v404, 64
    %v1579 = vpop.permute.xlu0 %1578
    %v1582 = vsel %vm572, %v1575, 0
    %1584 = vmatprep.subr.mxu0 0.0
    %1585 = vmatpush1.msra.mxu0 0.0
    %1586 = vmatprep.subr.mxu0 0.0
    %1587 = vmatpush1.msra.mxu0 0.0
    %1588 = vmatprep.subr.mxu0 0.0
    %1589 = vmatpush1.msra.mxu0 0.0
    %1590 = vmatprep.subr.mxu0 0.0
    %1591 = vmatpush1.msra.mxu0 0.0
    %1592 = vmatprep.subr.mxu0 0.0
    %1593 = vmatpush1.msra.mxu0 0.0
    %1594 = vmatprep.subr.mxu0 0.0
    %1595 = vmatpush1.msra.mxu0 0.0
    %1596 = vmatprep.subr.mxu0 0.0
    %1597 = vmatpush1.msra.mxu0 0.0
    %1598 = vmatprep.subr.mxu0 0.0
    %1599 = vmatpush1.msra.mxu0 0.0
    %1600 = vmatprep.subr.mxu0 0.0
    %1601 = vmatpush1.msra.mxu0 0.0
    %1602 = vmatprep.subr.mxu0 0.0
    %1603 = vmatpush1.msra.mxu0 0.0
    %1604 = vmatprep.subr.mxu0 0.0
    %1605 = vmatpush1.msra.mxu0 0.0
    %1606 = vmatprep.subr.mxu0 0.0
    %1607 = vmatpush1.msra.mxu0 0.0
    %1608 = vmatprep.subr.mxu0 0.0
    %1609 = vmatpush1.msra.mxu0 0.0
    %1610 = vmatprep.subr.mxu0 0.0
    %1611 = vmatpush1.msra.mxu0 0.0
    %1612 = vmatprep.subr.mxu0 0.0
    %1613 = vmatpush1.msra.mxu0 0.0
    %1614 = vmatprep.subr.mxu0 0.0
    %1615 = vmatpush1.msra.mxu0 %v1579
    %1616 = vmatprep.subr.mxu0 0.0
    %1617 = vmatpush2.msra.mxu0 0.0
    %1618 = vmatprep.subr.mxu0 0.0
    %1619 = vmatpush2.msra.mxu0 0.0
    %1620 = vmatprep.subr.mxu0 0.0
    %1621 = vmatpush2.msra.mxu0 0.0
    %1622 = vmatprep.subr.mxu0 0.0
    %1623 = vmatpush2.msra.mxu0 0.0
    %1624 = vmatprep.subr.mxu0 0.0
    %1625 = vmatpush2.msra.mxu0 0.0
    %1626 = vmatprep.subr.mxu0 0.0
    %1627 = vmatpush2.msra.mxu0 0.0
    %1628 = vmatprep.subr.mxu0 0.0
    %1629 = vmatpush2.msra.mxu0 0.0
    %1630 = vmatprep.subr.mxu0 0.0
    %1631 = vmatpush2.msra.mxu0 0.0
    %1632 = vmatprep.subr.mxu0 0.0
    %1633 = vmatpush2.msra.mxu0 0.0
    %1634 = vmatprep.subr.mxu0 0.0
    %1635 = vmatpush2.msra.mxu0 0.0
    %1636 = vmatprep.subr.mxu0 0.0
    %1637 = vmatpush2.msra.mxu0 0.0
    %1638 = vmatprep.subr.mxu0 0.0
    %1639 = vmatpush2.msra.mxu0 0.0
    %1640 = vmatprep.subr.mxu0 0.0
    %1641 = vmatpush2.msra.mxu0 0.0
    %1642 = vmatprep.subr.mxu0 0.0
    %1643 = vmatpush2.msra.mxu0 0.0
    %1644 = vmatprep.subr.mxu0 0.0
    %1645 = vmatpush2.msra.mxu0 0.0
    %1646 = vmatprep.subr.mxu0 0.0
    %1647 = vmatpush2.msra.mxu0 0.0
    %1648 = vmatprep.mubr.f32.mxu0 0.0
    %1649 = vmatmul.mubr.f32.gmra.mxu0 %v1582
    %v1650 = vpop.f32.mrf.mxu0
    %v1651 = vadd.f32 0.0, %v1650
    %v1652 = vpop.f32.mrf.mxu0
    %1653 = vdwg.mxu0
    %1655 = vrot.lane.b32.xlu0 %v410, 64
    %v1656 = vpop.permute.xlu0 %1655
    %v1659 = vsel %vm572, %v1576, 0
    %1661 = vmatprep.subr.mxu0 0.0
    %1662 = vmatpush1.msra.mxu0 0.0
    %1663 = vmatprep.subr.mxu0 0.0
    %1664 = vmatpush1.msra.mxu0 0.0
    %1665 = vmatprep.subr.mxu0 0.0
    %1666 = vmatpush1.msra.mxu0 0.0
    %1667 = vmatprep.subr.mxu0 0.0
    %1668 = vmatpush1.msra.mxu0 0.0
    %1669 = vmatprep.subr.mxu0 0.0
    %1670 = vmatpush1.msra.mxu0 0.0
    %1671 = vmatprep.subr.mxu0 0.0
    %1672 = vmatpush1.msra.mxu0 0.0
    %1673 = vmatprep.subr.mxu0 0.0
    %1674 = vmatpush1.msra.mxu0 0.0
    %1675 = vmatprep.subr.mxu0 0.0
    %1676 = vmatpush1.msra.mxu0 0.0
    %1677 = vmatprep.subr.mxu0 0.0
    %1678 = vmatpush1.msra.mxu0 0.0
    %1679 = vmatprep.subr.mxu0 0.0
    %1680 = vmatpush1.msra.mxu0 0.0
    %1681 = vmatprep.subr.mxu0 0.0
    %1682 = vmatpush1.msra.mxu0 0.0
    %1683 = vmatprep.subr.mxu0 0.0
    %1684 = vmatpush1.msra.mxu0 0.0
    %1685 = vmatprep.subr.mxu0 0.0
    %1686 = vmatpush1.msra.mxu0 0.0
    %1687 = vmatprep.subr.mxu0 0.0
    %1688 = vmatpush1.msra.mxu0 0.0
    %1689 = vmatprep.subr.mxu0 0.0
    %1690 = vmatpush1.msra.mxu0 0.0
    %1691 = vmatprep.subr.mxu0 0.0
    %1692 = vmatpush1.msra.mxu0 %v1656
    %1693 = vmatprep.subr.mxu0 0.0
    %1694 = vmatpush2.msra.mxu0 0.0
    %1695 = vmatprep.subr.mxu0 0.0
    %1696 = vmatpush2.msra.mxu0 0.0
    %1697 = vmatprep.subr.mxu0 0.0
    %1698 = vmatpush2.msra.mxu0 0.0
    %1699 = vmatprep.subr.mxu0 0.0
    %1700 = vmatpush2.msra.mxu0 0.0
    %1701 = vmatprep.subr.mxu0 0.0
    %1702 = vmatpush2.msra.mxu0 0.0
    %1703 = vmatprep.subr.mxu0 0.0
    %1704 = vmatpush2.msra.mxu0 0.0
    %1705 = vmatprep.subr.mxu0 0.0
    %1706 = vmatpush2.msra.mxu0 0.0
    %1707 = vmatprep.subr.mxu0 0.0
    %1708 = vmatpush2.msra.mxu0 0.0
    %1709 = vmatprep.subr.mxu0 0.0
    %1710 = vmatpush2.msra.mxu0 0.0
    %1711 = vmatprep.subr.mxu0 0.0
    %1712 = vmatpush2.msra.mxu0 0.0
    %1713 = vmatprep.subr.mxu0 0.0
    %1714 = vmatpush2.msra.mxu0 0.0
    %1715 = vmatprep.subr.mxu0 0.0
    %1716 = vmatpush2.msra.mxu0 0.0
    %1717 = vmatprep.subr.mxu0 0.0
    %1718 = vmatpush2.msra.mxu0 0.0
    %1719 = vmatprep.subr.mxu0 0.0
    %1720 = vmatpush2.msra.mxu0 0.0
    %1721 = vmatprep.subr.mxu0 0.0
    %1722 = vmatpush2.msra.mxu0 0.0
    %1723 = vmatprep.subr.mxu0 0.0
    %1724 = vmatpush2.msra.mxu0 0.0
    %1725 = vmatprep.mubr.f32.mxu0 0.0
    %1726 = vmatmul.mubr.f32.gmra.mxu0 %v1659
    %v1727 = vpop.f32.mrf.mxu0
    %v1728 = vadd.f32 0.0, %v1727
    %v1729 = vpop.f32.mrf.mxu0
    %1730 = vdwg.mxu0
    %1733 = vrot.lane.b32.xlu0 %v995, 64
    %v1734 = vpop.permute.xlu0 %1733
    %1735 = vrot.lane.b32.xlu0 %v1072, 64
    %v1736 = vpop.permute.xlu0 %1735
    %1741 = vrot.lane.b32.xlu0 %v1651, 64
    %v1742 = vpop.permute.xlu0 %1741
    %1743 = vrot.lane.b32.xlu0 %v1728, 64
    %v1744 = vpop.permute.xlu0 %1743
    %v1747 = vsel %vm417, %v665, %v1734
    %v1748 = vsel %vm417, %v738, %v1736
    %v1749 = vsel %vm417, %v1321, %v1742
    %v1750 = vsel %vm417, %v1394, %v1744
    %v1751 = vld [vmem:[%s2] sm:$0xff]
    %v1752 = vld [vmem:[%s2 + $0x8] sm:$0xff]
    %v1753 = vld [vmem:[%s2 + $0x10] sm:$0xff]
    %v1754 = vld [vmem:[%s2 + $0x18] sm:$0xff]
    %v1755 = vld [vmem:[%s2 + $0x20] sm:$0xff]
    %v1756 = vld [vmem:[%s2 + $0x28] sm:$0xff]
    %v1757 = vld [vmem:[%s2 + $0x30] sm:$0xff]
    %v1758 = vld [vmem:[%s2 + $0x38] sm:$0xff]
    %v1759 = vld [vmem:[%s2 + $0x40] sm:$0xff]
    %v1760 = vld [vmem:[%s2 + $0x48] sm:$0xff]
    %v1761 = vld [vmem:[%s2 + $0x50] sm:$0xff]
    %v1762 = vld [vmem:[%s2 + $0x58] sm:$0xff]
    %v1763 = vld [vmem:[%s2 + $0x60] sm:$0xff]
    %v1764 = vld [vmem:[%s2 + $0x68] sm:$0xff]
    %v1765 = vld [vmem:[%s2 + $0x70] sm:$0xff]
    %v1766 = vld [vmem:[%s2 + $0x78] sm:$0xff]
    %v1767 = vld [vmem:[%s2 + $0x80] sm:$0xff]
    %v1768 = vld [vmem:[%s2 + $0x88] sm:$0xff]
    %v1769 = vld [vmem:[%s2 + $0x90] sm:$0xff]
    %v1770 = vld [vmem:[%s2 + $0x98] sm:$0xff]
    %v1771 = vld [vmem:[%s2 + $0xa0] sm:$0xff]
    %v1772 = vld [vmem:[%s2 + $0xa8] sm:$0xff]
    %v1773 = vld [vmem:[%s2 + $0xb0] sm:$0xff]
    %v1774 = vld [vmem:[%s2 + $0xb8] sm:$0xff]
    %v1775 = vld [vmem:[%s2 + $0xc0] sm:$0xff]
    %v1776 = vld [vmem:[%s2 + $0xc8] sm:$0xff]
    %v1777 = vld [vmem:[%s2 + $0xd0] sm:$0xff]
    %v1778 = vld [vmem:[%s2 + $0xd8] sm:$0xff]
    %v1779 = vld [vmem:[%s2 + $0xe0] sm:$0xff]
    %v1780 = vld [vmem:[%s2 + $0xe8] sm:$0xff]
    %v1781 = vld [vmem:[%s2 + $0xf0] sm:$0xff]
    %v1782 = vld [vmem:[%s2 + $0xf8] sm:$0xff]
    %v1783 = vld [vmem:[%s2 + $0x100] sm:$0xff]
    %v1784 = vld [vmem:[%s2 + $0x108] sm:$0xff]
    %v1785 = vld [vmem:[%s2 + $0x110] sm:$0xff]
    %v1786 = vld [vmem:[%s2 + $0x118] sm:$0xff]
    %v1787 = vld [vmem:[%s2 + $0x120] sm:$0xff]
    %v1788 = vld [vmem:[%s2 + $0x128] sm:$0xff]
    %v1789 = vld [vmem:[%s2 + $0x130] sm:$0xff]
    %v1790 = vld [vmem:[%s2 + $0x138] sm:$0xff]
    %v1791 = vld [vmem:[%s2 + $0x140] sm:$0xff]
    %v1792 = vld [vmem:[%s2 + $0x148] sm:$0xff]
    %v1793 = vld [vmem:[%s2 + $0x150] sm:$0xff]
    %v1794 = vld [vmem:[%s2 + $0x158] sm:$0xff]
    %v1795 = vld [vmem:[%s2 + $0x160] sm:$0xff]
    %v1796 = vld [vmem:[%s2 + $0x168] sm:$0xff]
    %v1797 = vld [vmem:[%s2 + $0x170] sm:$0xff]
    %v1798 = vld [vmem:[%s2 + $0x178] sm:$0xff]
    %v1799 = vld [vmem:[%s2 + $0x180] sm:$0xff]
    %v1800 = vld [vmem:[%s2 + $0x188] sm:$0xff]
    %v1801 = vld [vmem:[%s2 + $0x190] sm:$0xff]
    %v1802 = vld [vmem:[%s2 + $0x198] sm:$0xff]
    %v1803 = vld [vmem:[%s2 + $0x1a0] sm:$0xff]
    %v1804 = vld [vmem:[%s2 + $0x1a8] sm:$0xff]
    %v1805 = vld [vmem:[%s2 + $0x1b0] sm:$0xff]
    %v1806 = vld [vmem:[%s2 + $0x1b8] sm:$0xff]
    %v1807 = vld [vmem:[%s2 + $0x1c0] sm:$0xff]
    %v1808 = vld [vmem:[%s2 + $0x1c8] sm:$0xff]
    %v1809 = vld [vmem:[%s2 + $0x1d0] sm:$0xff]
    %v1810 = vld [vmem:[%s2 + $0x1d8] sm:$0xff]
    %v1811 = vld [vmem:[%s2 + $0x1e0] sm:$0xff]
    %v1812 = vld [vmem:[%s2 + $0x1e8] sm:$0xff]
    %v1813 = vld [vmem:[%s2 + $0x1f0] sm:$0xff]
    %v1814 = vld [vmem:[%s2 + $0x1f8] sm:$0xff]
    %v1815 = vld [vmem:[%s3] sm:$0x3]
    %v1817 = vlaneseq
    %v1818 = vshrl.u32 %v1817, 7
    %v1819 = vsub.s32 0, %v1818
    %v1820 = vrot.slane %v1815, %v1819
    %v1821 = vlaneseq
    %v1822 = vshrl.u32 %v1821, 7
    %v1823 = vsub.s32 1, %v1822
    %v1824 = vrot.slane %v1815, %v1823
    %1827 = vmatprep.subr.mxu0 %v1782
    %1828 = vmatpush1.msra.mxu0 %v1781
    %1829 = vmatprep.subr.mxu0 %v1780
    %1830 = vmatpush1.msra.mxu0 %v1779
    %1831 = vmatprep.subr.mxu0 %v1778
    %1832 = vmatpush1.msra.mxu0 %v1777
    %1833 = vmatprep.subr.mxu0 %v1776
    %1834 = vmatpush1.msra.mxu0 %v1775
    %1835 = vmatprep.subr.mxu0 %v1774
    %1836 = vmatpush1.msra.mxu0 %v1773
    %1837 = vmatprep.subr.mxu0 %v1772
    %1838 = vmatpush1.msra.mxu0 %v1771
    %1839 = vmatprep.subr.mxu0 %v1770
    %1840 = vmatpush1.msra.mxu0 %v1769
    %1841 = vmatprep.subr.mxu0 %v1768
    %1842 = vmatpush1.msra.mxu0 %v1767
    %1843 = vmatprep.subr.mxu0 %v1766
    %1844 = vmatpush1.msra.mxu0 %v1765
    %1845 = vmatprep.subr.mxu0 %v1764
    %1846 = vmatpush1.msra.mxu0 %v1763
    %1847 = vmatprep.subr.mxu0 %v1762
    %1848 = vmatpush1.msra.mxu0 %v1761
    %1849 = vmatprep.subr.mxu0 %v1760
    %1850 = vmatpush1.msra.mxu0 %v1759
    %1851 = vmatprep.subr.mxu0 %v1758
    %1852 = vmatpush1.msra.mxu0 %v1757
    %1853 = vmatprep.subr.mxu0 %v1756
    %1854 = vmatpush1.msra.mxu0 %v1755
    %1855 = vmatprep.subr.mxu0 %v1754
    %1856 = vmatpush1.msra.mxu0 %v1753
    %1857 = vmatprep.subr.mxu0 %v1752
    %1858 = vmatpush1.msra.mxu0 %v1751
    %1859 = vmatprep.subr.mxu0 %v1814
    %1860 = vmatpush2.msra.mxu0 %v1813
    %1861 = vmatprep.subr.mxu0 %v1812
    %1862 = vmatpush2.msra.mxu0 %v1811
    %1863 = vmatprep.subr.mxu0 %v1810
    %1864 = vmatpush2.msra.mxu0 %v1809
    %1865 = vmatprep.subr.mxu0 %v1808
    %1866 = vmatpush2.msra.mxu0 %v1807
    %1867 = vmatprep.subr.mxu0 %v1806
    %1868 = vmatpush2.msra.mxu0 %v1805
    %1869 = vmatprep.subr.mxu0 %v1804
    %1870 = vmatpush2.msra.mxu0 %v1803
    %1871 = vmatprep.subr.mxu0 %v1802
    %1872 = vmatpush2.msra.mxu0 %v1801
    %1873 = vmatprep.subr.mxu0 %v1800
    %1874 = vmatpush2.msra.mxu0 %v1799
    %1875 = vmatprep.subr.mxu0 %v1798
    %1876 = vmatpush2.msra.mxu0 %v1797
    %1877 = vmatprep.subr.mxu0 %v1796
    %1878 = vmatpush2.msra.mxu0 %v1795
    %1879 = vmatprep.subr.mxu0 %v1794
    %1880 = vmatpush2.msra.mxu0 %v1793
    %1881 = vmatprep.subr.mxu0 %v1792
    %1882 = vmatpush2.msra.mxu0 %v1791
    %1883 = vmatprep.subr.mxu0 %v1790
    %1884 = vmatpush2.msra.mxu0 %v1789
    %1885 = vmatprep.subr.mxu0 %v1788
    %1886 = vmatpush2.msra.mxu0 %v1787
    %1887 = vmatprep.subr.mxu0 %v1786
    %1888 = vmatpush2.msra.mxu0 %v1785
    %1889 = vmatprep.subr.mxu0 %v1784
    %1890 = vmatpush2.msra.mxu0 %v1783
    %1891 = vmatprep.mubr.f32.mxu0 %v1749
    %1892 = vmatmul.mubr.f32.gmra.mxu0 %v1747
    %v1893 = vpop.f32.mrf.mxu0
    %v1894 = vadd.f32 %v1820, %v1893
    %v1895 = vpop.f32.mrf.mxu0
    %v1896 = vadd.f32 %v1824, %v1895
    %1897 = vmatprep.mubr.f32.mxu0 %v1750
    %1898 = vmatmul.mubr.f32.gmra.mxu0 %v1748
    %v1899 = vpop.f32.mrf.mxu0
    %v1900 = vadd.f32 %v1820, %v1899
    %v1901 = vpop.f32.mrf.mxu0
    %v1902 = vadd.f32 %v1824, %v1901
    %1903 = vdwg.mxu0
    %1904 = vst [vmem:[#allocation5] sm:$0xff] %v1894
    %1905 = vst.msk [vmem:[#allocation5 + $0x8] sm:$0xff] %vm174, %v1896
    %1906 = vst [vmem:[#allocation5 + $0x10] sm:$0xff] %v1900
    %1907 = vst.msk [vmem:[#allocation5 + $0x18] sm:$0xff] %vm174, %v1902
    // Predicated region
    $region22: #{tpu_custom_call.1} parent=1 // pred_check
      _
    $region23: #{tpu_custom_call.1} parent=1 // pred_check_branch
      %1909 = sbr.rel (0) target = $region25
    $region24: #{tpu_custom_call.1} parent=1 // pred_region
      %s1911 = ssub.s32 512, 512
      %1912 = vsyncadd [#allocation4], %s1911
      %s1913 = sshll.u32 [#allocation5], 4
      %s1914 = int_to_ptr.vmem [resolvable:$true] %s1913
      %1919 = dma.vmem_to_hbm [thread:$0]  %s1914, 512, %s4, [#allocation4], 256, 256, 16
    $region25: #{tpu_custom_call.1} parent=1 // pred_fallthru
      _
    // Predicated region
    $region26: #{tpu_custom_call.1} parent=1 // pred_check
      _
    $region27: #{tpu_custom_call.1} parent=1 // pred_check_branch
      %1921 = sbr.rel (0) target = $region29
    $region28: #{tpu_custom_call.1} parent=1 // pred_region
      %1922 = dma.done [#allocation4], 512
    $region29: #{tpu_custom_call.1} parent=1 // pred_fallthru
      _
    %1923 = vsyncpa [#allocation3], 1
    %1924 = vsyncpa [#allocation4], 1

</llo_original>
